<compile_context>
chip_gen: v5e
topology: v5e:2x2
jax: 0.10.0
libtpu: 0.0.40
codegen_flags: <defaults>
</compile_context>

<pallas_src>
import jax
import jax.numpy as jnp
from jax.experimental import pallas as pl
from jax.experimental.pallas import tpu as pltpu

# Accurate f32 matmuls everywhere (kernel, interpret mode, and the pure-JAX
# reference) so the comparison tolerance is meaningful on TPU.
jax.config.update("jax_default_matmul_precision", "float32")


def _round_up(v, m):
    return ((v + m - 1) // m) * m


# ---------------------------------------------------------------------------
# Weight-slab layout: every MLP weight/bias block packed into one
# [rows, hidden_nf] f32 array; each block starts on an 8-row (sublane tile)
# boundary so every in-kernel static slice is tile-aligned.
# ---------------------------------------------------------------------------
def _slab_layout(node_nf, edge_nf, global_nf, hidden_nf):
    blocks = (("w1a", node_nf), ("w1b", edge_nf), ("b1", 1), ("w1c", hidden_nf),
              ("b1c", 1), ("w2a", node_nf), ("w2b", hidden_nf),
              ("w2c", global_nf), ("b2", 1), ("w2d", hidden_nf), ("b2d", 1))
    lay, off = {}, 0
    for name, rows in blocks:
        lay[name] = (off, rows)
        off += _round_up(rows, 8)
    return lay, off


def prepare_kernel_params(params, node_nf, edge_nf, global_nf, hidden_nf):
    """One-time packing of all MLP weights into a single slab (one DMA)."""
    lay, total = _slab_layout(node_nf, edge_nf, global_nf, hidden_nf)
    w1, w2 = params["m1_w1"], params["m2_w1"]
    pieces = {
        "w1a": w1[:node_nf],                      # x[row] part of node_mlp_1 L1
        "w1b": w1[node_nf:],                      # edge_attr part
        "b1": params["m1_b1"],
        "w1c": params["m1_w2"],
        "b1c": params["m1_b2"],
        "w2a": w2[:node_nf],                      # x part of node_mlp_2 L1
        "w2b": w2[node_nf:node_nf + hidden_nf],   # agg part
        "w2c": w2[node_nf + hidden_nf:],          # u[batch] part
        "b2": params["m2_b1"],
        "w2d": params["m2_w2"],                   # [hidden, node_nf]
        "b2d": params["m2_b2"],                   # [1, node_nf]
    }
    slab = jnp.zeros((total, hidden_nf), jnp.float32)
    for name, arr in pieces.items():
        off, rows = lay[name]
        slab = slab.at[off:off + rows, :arr.shape[1]].set(arr.astype(jnp.float32))
    return slab


# ---------------------------------------------------------------------------
# Fused kernel (single VMEM block; graph is tiny).
# ---------------------------------------------------------------------------
def node_model_kernel(row_ref, col_ref, bat_ref, x_ref, ea_ref, u_ref, w_ref,
                      o_ref):
    f32 = jnp.float32
    n, node_nf = x_ref.shape
    e, edge_nf = ea_ref.shape
    b, global_nf = u_ref.shape
    hid = w_ref.shape[1]
    out_nf = o_ref.shape[1]
    lay, _ = _slab_layout(node_nf, edge_nf, global_nf, hid)

    def W(name, lanes=None):
        off, rows = lay[name]
        return w_ref[off:off + rows, 0:(hid if lanes is None else lanes)]

    # ---- edge MLP (node_mlp_1): cat([x[row], edge_attr]) @ W ----------------
    #      == (x @ W_x)[row] + edge_attr @ W_e ; gather as one-hot MXU matmul.
    xw = jnp.dot(x_ref[...], W("w1a"), preferred_element_type=f32)        # [N,H]
    row_oh = (jax.lax.broadcasted_iota(jnp.int32, (e, n), 1)
              == row_ref[...]).astype(f32)                                # [E,N]
    h = jnp.dot(row_oh, xw, preferred_element_type=f32)                   # [E,H]
    h = h + jnp.dot(ea_ref[...], W("w1b"), preferred_element_type=f32)
    h = jnp.maximum(h + W("b1"), 0.0)
    eo = jnp.dot(h, W("w1c"), preferred_element_type=f32) + W("b1c")      # [E,H]

    # ---- scatter-mean over destination nodes --------------------------------
    # mask[n, e] = (n == col[e]) : iota along the NODE axis (dim 0).
    mask = (jax.lax.broadcasted_iota(jnp.int32, (n, e), 0)
            == col_ref[...]).astype(f32)                                  # [N,E]
    sums = jnp.dot(mask, eo, preferred_element_type=f32)                  # [N,H]
    cnt = jnp.sum(mask, axis=1, keepdims=True)                            # [N,1] (XLU)
    agg = sums / jnp.maximum(cnt, 1.0)                                    # empty -> 0

    # ---- node MLP (node_mlp_2): cat([x, agg, u[batch]]) @ W split -----------
    uw = jnp.dot(u_ref[...], W("w2c"), preferred_element_type=f32)        # [B,H]
    bat_oh = (jax.lax.broadcasted_iota(jnp.int32, (n, b), 1)
              == bat_ref[...]).astype(f32)                                # [N,B]
    h2 = jnp.dot(x_ref[...], W("w2a"), preferred_element_type=f32)
    h2 = h2 + jnp.dot(agg, W("w2b"), preferred_element_type=f32)
    h2 = h2 + jnp.dot(bat_oh, uw, preferred_element_type=f32)
    h2 = jnp.maximum(h2 + W("b2"), 0.0)
    o_ref[...] = (jnp.dot(h2, W("w2d", out_nf), preferred_element_type=f32)
                  + W("b2d", out_nf))


# ---------------------------------------------------------------------------
# NodeModel forward: one pallas_call, no padding glue.
# ---------------------------------------------------------------------------
@jax.jit
def node_model_forward(wslab, x, edge_index, edge_attr, u, batch):
    n, node_nf = x.shape
    e, edge_nf = edge_attr.shape
    b, global_nf = u.shape
    hid = wslab.shape[1]

    # 2-D index tensors shaped exactly as the kernel's iota-compares need them.
    row = edge_index[0].reshape(e, 1).astype(jnp.int32)
    col = edge_index[1].reshape(1, e).astype(jnp.int32)
    bat = batch.reshape(n, 1).astype(jnp.int32)

    inputs = (row, col, bat, x, edge_attr, u, wslab)

    flops = 2 * (n * node_nf * hid + e * n * hid + e * edge_nf * hid
                 + e * hid * hid + n * e * hid + b * global_nf * hid
                 + n * b * hid + n * node_nf * hid + n * hid * hid
                 + n * hid * node_nf)
    bytes_accessed = (sum(int(a.size) * a.dtype.itemsize for a in inputs)
                      + n * node_nf * 4)

    vmem = pl.BlockSpec(memory_space=pltpu.MemorySpace.VMEM)
    return pl.pallas_call(
        node_model_kernel,
        out_shape=jax.ShapeDtypeStruct((n, node_nf), jnp.float32),
        in_specs=[vmem] * len(inputs),
        out_specs=vmem,
        cost_estimate=pl.CostEstimate(flops=flops, transcendentals=0,
                                      bytes_accessed=bytes_accessed),
    )(*inputs)


# ---------------------------------------------------------------------------
# Pure-JAX reference (mirrors the PyTorch module exactly)
# ---------------------------------------------------------------------------
def node_model_reference(params, x, edge_index, edge_attr, u, batch):
    row, col = edge_index[0], edge_index[1]
    n = x.shape[0]

    def mlp(z, w1, b1, w2, b2):
        h = jnp.maximum(z @ w1 + b1, 0.0)
        return h @ w2 + b2

    out = mlp(jnp.concatenate([x[row], edge_attr], axis=1),
              params["m1_w1"], params["m1_b1"], params["m1_w2"], params["m1_b2"])
    sums = jnp.zeros((n, out.shape[1]), jnp.float32).at[col].add(out)
    cnt = jnp.zeros((n, 1), jnp.float32).at[col].add(1.0)
    agg = sums / jnp.maximum(cnt, 1.0)
    z = jnp.concatenate([x, agg, u[batch]], axis=1)
    return mlp(z, params["m2_w1"], params["m2_b1"], params["m2_w2"], params["m2_b2"])


# ---------------------------------------------------------------------------
# Deterministic parameter init (same shapes as the PyTorch module)
# ---------------------------------------------------------------------------
def init_params(key, node_nf, edge_nf, global_nf, hidden_nf):
    ks = jax.random.split(key, 8)

    def lin(kw, kb, fan_in, fan_out):
        bound = 1.0 / jnp.sqrt(fan_in)
        w = jax.random.uniform(kw, (fan_in, fan_out), jnp.float32, -bound, bound)
        b = jax.random.uniform(kb, (1, fan_out), jnp.float32, -bound, bound)
        return w, b

    m1_w1, m1_b1 = lin(ks[0], ks[1], node_nf + edge_nf, hidden_nf)
    m1_w2, m1_b2 = lin(ks[2], ks[3], hidden_nf, hidden_nf)
    m2_w1, m2_b1 = lin(ks[4], ks[5], node_nf + hidden_nf + global_nf, hidden_nf)
    m2_w2, m2_b2 = lin(ks[6], ks[7], hidden_nf, node_nf)
    return dict(m1_w1=m1_w1, m1_b1=m1_b1, m1_w2=m1_w2, m1_b2=m1_b2,
                m2_w1=m2_w1, m2_b1=m2_b1, m2_w2=m2_w2, m2_b2=m2_b2)


if __name__ == "__main__":
    node_nf, edge_nf, global_nf, hidden_nf = 8, 4, 6, 32
    N, E, B = 16, 24, 2

    key = jax.random.PRNGKey(0)
    kp, kx, ke, ku, kr, kc = jax.random.split(key, 6)

    params = init_params(kp, node_nf, edge_nf, global_nf, hidden_nf)
    wslab = prepare_kernel_params(params, node_nf, edge_nf, global_nf, hidden_nf)

    x = jax.random.normal(kx, (N, node_nf), jnp.float32)
    edge_attr = jax.random.normal(ke, (E, edge_nf), jnp.float32)
    u = jax.random.normal(ku, (B, global_nf), jnp.float32)
    row = jax.random.randint(kr, (E,), 0, N, jnp.int32)
    col = jax.random.randint(kc, (E,), 0, N, jnp.int32)
    edge_index = jnp.stack([row, col], axis=0)               # [2, E]
    batch = jnp.concatenate([jnp.zeros(N // 2, jnp.int32),
                             jnp.ones(N - N // 2, jnp.int32)])

    out = jax.block_until_ready(
        node_model_forward(wslab, x, edge_index, edge_attr, u, batch))
    ref = node_model_reference(params, x, edge_index, edge_attr, u, batch)

    assert out.shape == (N, node_nf)
    max_err = float(jnp.max(jnp.abs(out - ref)))
    assert jnp.allclose(out, ref, atol=2e-3, rtol=2e-3), max_err
    print("KERNEL_OK")
</pallas_src>

<mosaic_0001>
module attributes {stable_mosaic.version = 11 : i64} {
  func.func @node_model_kernel(%arg0: memref<24x1xi32, #tpu.memory_space<vmem>>, %arg1: memref<1x24xi32, #tpu.memory_space<vmem>>, %arg2: memref<16x1xi32, #tpu.memory_space<vmem>>, %arg3: memref<16x8xf32, #tpu.memory_space<vmem>>, %arg4: memref<24x4xf32, #tpu.memory_space<vmem>>, %arg5: memref<2x6xf32, #tpu.memory_space<vmem>>, %arg6: memref<160x32xf32, #tpu.memory_space<vmem>>, %arg7: memref<16x8xf32, #tpu.memory_space<vmem>>) attributes {dimension_semantics = [], scalar_prefetch = 0 : i64, scratch_operands = 0 : i64, tpu.core_type = #tpu.core_type<tc>} {
    %c0 = arith.constant 0 : index
    %c0_0 = arith.constant 0 : index
    %0 = vector.load %arg3[%c0, %c0_0] : memref<16x8xf32, #tpu.memory_space<vmem>>, vector<16x8xf32>
    %c0_1 = arith.constant 0 : index
    %c0_2 = arith.constant 0 : index
    %1 = vector.load %arg6[%c0_1, %c0_2] : memref<160x32xf32, #tpu.memory_space<vmem>>, vector<8x32xf32>
    %cst = arith.constant dense<0.000000e+00> : vector<16x32xf32>
    %2 = tpu.matmul %0, %1, %cst {dimension_numbers = #tpu.dot_dimension_numbers<[1], [0], [0], [1], [0, 0, 1, 1], [], []>, precision = #tpu.contract_precision<fp32>} : vector<16x8xf32>, vector<8x32xf32>, vector<16x32xf32> -> vector<16x32xf32>
    %3 = tpu.iota {dimensions = array<i32: 1>} : vector<24x16xi32>
    %c0_3 = arith.constant 0 : index
    %c0_4 = arith.constant 0 : index
    %4 = vector.load %arg0[%c0_3, %c0_4] : memref<24x1xi32, #tpu.memory_space<vmem>>, vector<24x1xi32>
    %5 = vector.broadcast %4 : vector<24x1xi32> to vector<24x16xi32>
    %6 = arith.cmpi eq, %3, %5 : vector<24x16xi32>
    %7 = arith.extui %6 : vector<24x16xi1> to vector<24x16xi32>
    %8 = arith.sitofp %7 : vector<24x16xi32> to vector<24x16xf32>
    %cst_5 = arith.constant dense<0.000000e+00> : vector<24x32xf32>
    %9 = tpu.matmul %8, %2, %cst_5 {dimension_numbers = #tpu.dot_dimension_numbers<[1], [0], [0], [1], [0, 0, 1, 1], [], []>, precision = #tpu.contract_precision<fp32>} : vector<24x16xf32>, vector<16x32xf32>, vector<24x32xf32> -> vector<24x32xf32>
    %c0_6 = arith.constant 0 : index
    %c0_7 = arith.constant 0 : index
    %10 = vector.load %arg4[%c0_6, %c0_7] : memref<24x4xf32, #tpu.memory_space<vmem>>, vector<24x4xf32>
    %c8 = arith.constant 8 : index
    %c0_8 = arith.constant 0 : index
    %11 = vector.load %arg6[%c8, %c0_8] : memref<160x32xf32, #tpu.memory_space<vmem>>, vector<4x32xf32>
    %cst_9 = arith.constant dense<0.000000e+00> : vector<24x32xf32>
    %12 = tpu.matmul %10, %11, %cst_9 {dimension_numbers = #tpu.dot_dimension_numbers<[1], [0], [0], [1], [0, 0, 1, 1], [], []>, precision = #tpu.contract_precision<fp32>} : vector<24x4xf32>, vector<4x32xf32>, vector<24x32xf32> -> vector<24x32xf32>
    %13 = arith.addf %9, %12 : vector<24x32xf32>
    %c16 = arith.constant 16 : index
    %c0_10 = arith.constant 0 : index
    %14 = vector.load %arg6[%c16, %c0_10] : memref<160x32xf32, #tpu.memory_space<vmem>>, vector<1x32xf32>
    %15 = vector.broadcast %14 : vector<1x32xf32> to vector<24x32xf32>
    %16 = arith.addf %13, %15 : vector<24x32xf32>
    %cst_11 = arith.constant 0.000000e+00 : f32
    %17 = vector.broadcast %cst_11 : f32 to vector<24x32xf32>
    %18 = arith.maximumf %16, %17 : vector<24x32xf32>
    %c24 = arith.constant 24 : index
    %c0_12 = arith.constant 0 : index
    %19 = vector.load %arg6[%c24, %c0_12] : memref<160x32xf32, #tpu.memory_space<vmem>>, vector<32x32xf32>
    %cst_13 = arith.constant dense<0.000000e+00> : vector<24x32xf32>
    %20 = tpu.matmul %18, %19, %cst_13 {dimension_numbers = #tpu.dot_dimension_numbers<[1], [0], [0], [1], [0, 0, 1, 1], [], []>, precision = #tpu.contract_precision<fp32>} : vector<24x32xf32>, vector<32x32xf32>, vector<24x32xf32> -> vector<24x32xf32>
    %c56 = arith.constant 56 : index
    %c0_14 = arith.constant 0 : index
    %21 = vector.load %arg6[%c56, %c0_14] : memref<160x32xf32, #tpu.memory_space<vmem>>, vector<1x32xf32>
    %22 = vector.broadcast %21 : vector<1x32xf32> to vector<24x32xf32>
    %23 = arith.addf %20, %22 : vector<24x32xf32>
    %24 = tpu.iota {dimensions = array<i32: 0>} : vector<16x24xi32>
    %c0_15 = arith.constant 0 : index
    %c0_16 = arith.constant 0 : index
    %25 = vector.load %arg1[%c0_15, %c0_16] : memref<1x24xi32, #tpu.memory_space<vmem>>, vector<1x24xi32>
    %26 = vector.broadcast %25 : vector<1x24xi32> to vector<16x24xi32>
    %27 = arith.cmpi eq, %24, %26 : vector<16x24xi32>
    %28 = arith.extui %27 : vector<16x24xi1> to vector<16x24xi32>
    %29 = arith.sitofp %28 : vector<16x24xi32> to vector<16x24xf32>
    %cst_17 = arith.constant dense<0.000000e+00> : vector<16x32xf32>
    %30 = tpu.matmul %29, %23, %cst_17 {dimension_numbers = #tpu.dot_dimension_numbers<[1], [0], [0], [1], [0, 0, 1, 1], [], []>, precision = #tpu.contract_precision<fp32>} : vector<16x24xf32>, vector<24x32xf32>, vector<16x32xf32> -> vector<16x32xf32>
    %cst_18 = arith.constant dense<0.000000e+00> : vector<16xf32>
    %31 = vector.multi_reduction <add>, %29, %cst_18 [1] : vector<16x24xf32> to vector<16xf32>
    %32 = vector.shape_cast %31 : vector<16xf32> to vector<16x1xf32>
    %cst_19 = arith.constant 1.000000e+00 : f32
    %33 = vector.broadcast %cst_19 : f32 to vector<16x1xf32>
    %34 = arith.maximumf %32, %33 : vector<16x1xf32>
    %35 = vector.broadcast %34 : vector<16x1xf32> to vector<16x32xf32>
    %36 = arith.divf %30, %35 : vector<16x32xf32>
    %c0_20 = arith.constant 0 : index
    %c0_21 = arith.constant 0 : index
    %37 = vector.load %arg5[%c0_20, %c0_21] : memref<2x6xf32, #tpu.memory_space<vmem>>, vector<2x6xf32>
    %c104 = arith.constant 104 : index
    %c0_22 = arith.constant 0 : index
    %38 = vector.load %arg6[%c104, %c0_22] : memref<160x32xf32, #tpu.memory_space<vmem>>, vector<6x32xf32>
    %cst_23 = arith.constant dense<0.000000e+00> : vector<2x32xf32>
    %39 = tpu.matmul %37, %38, %cst_23 {dimension_numbers = #tpu.dot_dimension_numbers<[1], [0], [0], [1], [0, 0, 1, 1], [], []>, precision = #tpu.contract_precision<fp32>} : vector<2x6xf32>, vector<6x32xf32>, vector<2x32xf32> -> vector<2x32xf32>
    %40 = tpu.iota {dimensions = array<i32: 1>} : vector<16x2xi32>
    %c0_24 = arith.constant 0 : index
    %c0_25 = arith.constant 0 : index
    %41 = vector.load %arg2[%c0_24, %c0_25] : memref<16x1xi32, #tpu.memory_space<vmem>>, vector<16x1xi32>
    %42 = vector.broadcast %41 : vector<16x1xi32> to vector<16x2xi32>
    %43 = arith.cmpi eq, %40, %42 : vector<16x2xi32>
    %44 = arith.extui %43 : vector<16x2xi1> to vector<16x2xi32>
    %45 = arith.sitofp %44 : vector<16x2xi32> to vector<16x2xf32>
    %c0_26 = arith.constant 0 : index
    %c0_27 = arith.constant 0 : index
    %46 = vector.load %arg3[%c0_26, %c0_27] : memref<16x8xf32, #tpu.memory_space<vmem>>, vector<16x8xf32>
    %c64 = arith.constant 64 : index
    %c0_28 = arith.constant 0 : index
    %47 = vector.load %arg6[%c64, %c0_28] : memref<160x32xf32, #tpu.memory_space<vmem>>, vector<8x32xf32>
    %cst_29 = arith.constant dense<0.000000e+00> : vector<16x32xf32>
    %48 = tpu.matmul %46, %47, %cst_29 {dimension_numbers = #tpu.dot_dimension_numbers<[1], [0], [0], [1], [0, 0, 1, 1], [], []>, precision = #tpu.contract_precision<fp32>} : vector<16x8xf32>, vector<8x32xf32>, vector<16x32xf32> -> vector<16x32xf32>
    %c72 = arith.constant 72 : index
    %c0_30 = arith.constant 0 : index
    %49 = vector.load %arg6[%c72, %c0_30] : memref<160x32xf32, #tpu.memory_space<vmem>>, vector<32x32xf32>
    %cst_31 = arith.constant dense<0.000000e+00> : vector<16x32xf32>
    %50 = tpu.matmul %36, %49, %cst_31 {dimension_numbers = #tpu.dot_dimension_numbers<[1], [0], [0], [1], [0, 0, 1, 1], [], []>, precision = #tpu.contract_precision<fp32>} : vector<16x32xf32>, vector<32x32xf32>, vector<16x32xf32> -> vector<16x32xf32>
    %51 = arith.addf %48, %50 : vector<16x32xf32>
    %cst_32 = arith.constant dense<0.000000e+00> : vector<16x32xf32>
    %52 = tpu.matmul %45, %39, %cst_32 {dimension_numbers = #tpu.dot_dimension_numbers<[1], [0], [0], [1], [0, 0, 1, 1], [], []>, precision = #tpu.contract_precision<fp32>} : vector<16x2xf32>, vector<2x32xf32>, vector<16x32xf32> -> vector<16x32xf32>
    %53 = arith.addf %51, %52 : vector<16x32xf32>
    %c112 = arith.constant 112 : index
    %c0_33 = arith.constant 0 : index
    %54 = vector.load %arg6[%c112, %c0_33] : memref<160x32xf32, #tpu.memory_space<vmem>>, vector<1x32xf32>
    %55 = vector.broadcast %54 : vector<1x32xf32> to vector<16x32xf32>
    %56 = arith.addf %53, %55 : vector<16x32xf32>
    %cst_34 = arith.constant 0.000000e+00 : f32
    %57 = vector.broadcast %cst_34 : f32 to vector<16x32xf32>
    %58 = arith.maximumf %56, %57 : vector<16x32xf32>
    %c120 = arith.constant 120 : index
    %c0_35 = arith.constant 0 : index
    %59 = vector.load %arg6[%c120, %c0_35] : memref<160x32xf32, #tpu.memory_space<vmem>>, vector<32x8xf32>
    %cst_36 = arith.constant dense<0.000000e+00> : vector<16x8xf32>
    %60 = tpu.matmul %58, %59, %cst_36 {dimension_numbers = #tpu.dot_dimension_numbers<[1], [0], [0], [1], [0, 0, 1, 1], [], []>, precision = #tpu.contract_precision<fp32>} : vector<16x32xf32>, vector<32x8xf32>, vector<16x8xf32> -> vector<16x8xf32>
    %c152 = arith.constant 152 : index
    %c0_37 = arith.constant 0 : index
    %61 = vector.load %arg6[%c152, %c0_37] : memref<160x32xf32, #tpu.memory_space<vmem>>, vector<1x8xf32>
    %62 = vector.broadcast %61 : vector<1x8xf32> to vector<16x8xf32>
    %63 = arith.addf %60, %62 : vector<16x8xf32>
    %c0_38 = arith.constant 0 : index
    %c0_39 = arith.constant 0 : index
    %64 = vector.load %arg7[%c0_38, %c0_39] : memref<16x8xf32, #tpu.memory_space<vmem>>, vector<16x8xf32>
    tpu.vector_store %arg7[%c0_38, %c0_39], %63 {strides = array<i32>} : memref<16x8xf32, #tpu.memory_space<vmem>>, vector<16x8xf32>,
    return
  }
}

</mosaic_0001>

<llo_original>
// kernel: node_model_forward.1
$region0: #{node_model_forward.1}
  #allocation0 [shape = 'u32[]', space=smem, size = 0x4, offset = 0x4, fixed_abs, tag = 'smem constant byte address 0x4 - core index']
  #allocation1 [shape = 'u32[72,128]{1,0:T(1,128)}', space=vmem, size = 0x9000, scoped, tag = 'internal scratch']
  %s0 = inlined_call_operand.vmem [shape: s32[24,1], index: 0, kind: input, shape index: {}]
  %s1 = inlined_call_operand.vmem [shape: s32[1,24], index: 1, kind: input, shape index: {}]
  %s2 = inlined_call_operand.vmem [shape: s32[16,1], index: 2, kind: input, shape index: {}]
  %s3 = inlined_call_operand.vmem [shape: f32[16,8], index: 3, kind: input, shape index: {}]
  %s4 = inlined_call_operand.vmem [shape: f32[24,4], index: 4, kind: input, shape index: {}]
  %s5 = inlined_call_operand.vmem [shape: f32[2,6], index: 5, kind: input, shape index: {}]
  %s6 = inlined_call_operand.vmem [shape: f32[160,32], index: 6, kind: input, shape index: {}]
  %s7 = inlined_call_operand.vmem [shape: f32[16,8], index: 7, kind: output, shape index: {}]
  %s8 = sld [smem:[#allocation0]]
  $region38: #{node_model_forward.1} parent=0
    _
  %s10 = ssub.s32 1, %s8
  %s11 = scalar_select 0, %s10, %s8
  // Predicated region
  $region2: #{node_model_forward.1} parent=0 // pred_check
    _
  $region3: #{node_model_forward.1} parent=0 // pred_check_branch
    %13 = sbr.rel (0) target = $region5
  $region4: #{node_model_forward.1} parent=0 // pred_region
    _
  $region5: #{node_model_forward.1} parent=0 // pred_fallthru
    _
  // Predicated region
  $region6: #{node_model_forward.1} parent=0 // pred_check
    _
  $region7: #{node_model_forward.1} parent=0 // pred_check_branch
    %15 = sbr.rel (0) target = $region9
  $region8: #{node_model_forward.1} parent=0 // pred_region
    _
  $region9: #{node_model_forward.1} parent=0 // pred_fallthru
    _
  // Predicated region
  $region10: #{node_model_forward.1} parent=0 // pred_check
    _
  $region11: #{node_model_forward.1} parent=0 // pred_check_branch
    %17 = sbr.rel (0) target = $region13
  $region12: #{node_model_forward.1} parent=0 // pred_region
    _
  $region13: #{node_model_forward.1} parent=0 // pred_fallthru
    _
  // Predicated region
  $region14: #{node_model_forward.1} parent=0 // pred_check
    _
  $region15: #{node_model_forward.1} parent=0 // pred_check_branch
    %19 = sbr.rel (0) target = $region17
  $region16: #{node_model_forward.1} parent=0 // pred_region
    _
  $region17: #{node_model_forward.1} parent=0 // pred_fallthru
    _
  // Predicated region
  $region18: #{node_model_forward.1} parent=0 // pred_check
    _
  $region19: #{node_model_forward.1} parent=0 // pred_check_branch
    %21 = sbr.rel (0) target = $region21
  $region20: #{node_model_forward.1} parent=0 // pred_region
    _
  $region21: #{node_model_forward.1} parent=0 // pred_fallthru
    _
  // Predicated region
  $region22: #{node_model_forward.1} parent=0 // pred_check
    _
  $region23: #{node_model_forward.1} parent=0 // pred_check_branch
    %23 = sbr.rel (0) target = $region25
  $region24: #{node_model_forward.1} parent=0 // pred_region
    _
  $region25: #{node_model_forward.1} parent=0 // pred_fallthru
    _
  // Predicated region
  $region26: #{node_model_forward.1} parent=0 // pred_check
    _
  $region27: #{node_model_forward.1} parent=0 // pred_check_branch
    %25 = sbr.rel (0) target = $region29
  $region28: #{node_model_forward.1} parent=0 // pred_region
    _
  $region29: #{node_model_forward.1} parent=0 // pred_fallthru
    _
  %v26 = vld [vmem:[%s3] sm:$0xff]
  %v27 = vld [vmem:[%s3 + $0x8] sm:$0xff]
  %v28 = vld [vmem:[%s6] sm:$0xff]
  %vm29 = vcmask 64512
  %v31 = vsel %vm29, %v26, 0
  %v34 = vsel %vm29, %v27, 0
  %36 = vmatpush.msra.mxu0 0.0
  %37 = vmatpush.msra.mxu0 0.0
  %38 = vmatpush.msra.mxu0 0.0
  %39 = vmatpush.msra.mxu0 0.0
  %40 = vmatpush.msra.mxu0 0.0
  %41 = vmatpush.msra.mxu0 0.0
  %42 = vmatpush.msra.mxu0 0.0
  %43 = vmatpush.msra.mxu0 0.0
  %44 = vmatpush.msra.mxu0 0.0
  %45 = vmatpush.msra.mxu0 0.0
  %46 = vmatpush.msra.mxu0 0.0
  %47 = vmatpush.msra.mxu0 0.0
  %48 = vmatpush.msra.mxu0 0.0
  %49 = vmatpush.msra.mxu0 0.0
  %50 = vmatpush.msra.mxu0 0.0
  %v51 = vand.u32 %v28, 4294901760
  %52 = vmatpush.msra.mxu0 %v51
  %v53 = vand.u32 %v31, 4294901760
  %v54 = vsub.f32 %v31, %v53
  %v55 = vand.u32 %v54, 4294901760
  %v56 = vsub.f32 %v54, %v55
  %v57 = vand.u32 %v56, 4294901760
  %58 = vmatmul.f32.gmra.mxu0 %v57
  %v59 = vpop.f32.mrf.mxu0
  %v60 = vadd.f32 0.0, %v59
  %v61 = vand.u32 %v34, 4294901760
  %v62 = vsub.f32 %v34, %v61
  %v63 = vand.u32 %v62, 4294901760
  %v64 = vsub.f32 %v62, %v63
  %v65 = vand.u32 %v64, 4294901760
  %66 = vmatmul.f32.gmra.mxu0 %v65
  %v67 = vpop.f32.mrf.mxu0
  %v68 = vadd.f32 0.0, %v67
  %69 = vdwg.mxu0
  %70 = vmatpush.msra.mxu0 0.0
  %71 = vmatpush.msra.mxu0 0.0
  %72 = vmatpush.msra.mxu0 0.0
  %73 = vmatpush.msra.mxu0 0.0
  %74 = vmatpush.msra.mxu0 0.0
  %75 = vmatpush.msra.mxu0 0.0
  %76 = vmatpush.msra.mxu0 0.0
  %77 = vmatpush.msra.mxu0 0.0
  %78 = vmatpush.msra.mxu0 0.0
  %79 = vmatpush.msra.mxu0 0.0
  %80 = vmatpush.msra.mxu0 0.0
  %81 = vmatpush.msra.mxu0 0.0
  %82 = vmatpush.msra.mxu0 0.0
  %83 = vmatpush.msra.mxu0 0.0
  %84 = vmatpush.msra.mxu0 0.0
  %v85 = vand.u32 %v28, 4294901760
  %v86 = vsub.f32 %v28, %v85
  %v87 = vand.u32 %v86, 4294901760
  %v88 = vsub.f32 %v86, %v87
  %v89 = vand.u32 %v88, 4294901760
  %90 = vmatpush.msra.mxu0 %v89
  %v91 = vand.u32 %v31, 4294901760
  %92 = vmatmul.f32.gmra.mxu0 %v91
  %v93 = vpop.f32.mrf.mxu0
  %v94 = vadd.f32 %v60, %v93
  %v95 = vand.u32 %v34, 4294901760
  %96 = vmatmul.f32.gmra.mxu0 %v95
  %v97 = vpop.f32.mrf.mxu0
  %v98 = vadd.f32 %v68, %v97
  %99 = vdwg.mxu0
  %100 = vmatpush.msra.mxu0 0.0
  %101 = vmatpush.msra.mxu0 0.0
  %102 = vmatpush.msra.mxu0 0.0
  %103 = vmatpush.msra.mxu0 0.0
  %104 = vmatpush.msra.mxu0 0.0
  %105 = vmatpush.msra.mxu0 0.0
  %106 = vmatpush.msra.mxu0 0.0
  %107 = vmatpush.msra.mxu0 0.0
  %108 = vmatpush.msra.mxu0 0.0
  %109 = vmatpush.msra.mxu0 0.0
  %110 = vmatpush.msra.mxu0 0.0
  %111 = vmatpush.msra.mxu0 0.0
  %112 = vmatpush.msra.mxu0 0.0
  %113 = vmatpush.msra.mxu0 0.0
  %114 = vmatpush.msra.mxu0 0.0
  %v115 = vand.u32 %v28, 4294901760
  %v116 = vsub.f32 %v28, %v115
  %117 = vmatpush.msra.mxu0 %v116
  %v118 = vand.u32 %v31, 4294901760
  %v119 = vsub.f32 %v31, %v118
  %120 = vmatmul.f32.gmra.mxu0 %v119
  %v121 = vpop.f32.mrf.mxu0
  %v122 = vadd.f32 %v94, %v121
  %v123 = vand.u32 %v34, 4294901760
  %v124 = vsub.f32 %v34, %v123
  %125 = vmatmul.f32.gmra.mxu0 %v124
  %v126 = vpop.f32.mrf.mxu0
  %v127 = vadd.f32 %v98, %v126
  %128 = vdwg.mxu0
  %129 = vmatpush.msra.mxu0 0.0
  %130 = vmatpush.msra.mxu0 0.0
  %131 = vmatpush.msra.mxu0 0.0
  %132 = vmatpush.msra.mxu0 0.0
  %133 = vmatpush.msra.mxu0 0.0
  %134 = vmatpush.msra.mxu0 0.0
  %135 = vmatpush.msra.mxu0 0.0
  %136 = vmatpush.msra.mxu0 0.0
  %137 = vmatpush.msra.mxu0 0.0
  %138 = vmatpush.msra.mxu0 0.0
  %139 = vmatpush.msra.mxu0 0.0
  %140 = vmatpush.msra.mxu0 0.0
  %141 = vmatpush.msra.mxu0 0.0
  %142 = vmatpush.msra.mxu0 0.0
  %143 = vmatpush.msra.mxu0 0.0
  %v144 = vand.u32 %v28, 4294901760
  %145 = vmatpush.msra.mxu0 %v144
  %v146 = vand.u32 %v31, 4294901760
  %v147 = vsub.f32 %v31, %v146
  %v148 = vand.u32 %v147, 4294901760
  %149 = vmatmul.f32.gmra.mxu0 %v148
  %v150 = vpop.f32.mrf.mxu0
  %v151 = vadd.f32 %v122, %v150
  %v152 = vand.u32 %v34, 4294901760
  %v153 = vsub.f32 %v34, %v152
  %v154 = vand.u32 %v153, 4294901760
  %155 = vmatmul.f32.gmra.mxu0 %v154
  %v156 = vpop.f32.mrf.mxu0
  %v157 = vadd.f32 %v127, %v156
  %158 = vdwg.mxu0
  %159 = vmatpush.msra.mxu0 0.0
  %160 = vmatpush.msra.mxu0 0.0
  %161 = vmatpush.msra.mxu0 0.0
  %162 = vmatpush.msra.mxu0 0.0
  %163 = vmatpush.msra.mxu0 0.0
  %164 = vmatpush.msra.mxu0 0.0
  %165 = vmatpush.msra.mxu0 0.0
  %166 = vmatpush.msra.mxu0 0.0
  %167 = vmatpush.msra.mxu0 0.0
  %168 = vmatpush.msra.mxu0 0.0
  %169 = vmatpush.msra.mxu0 0.0
  %170 = vmatpush.msra.mxu0 0.0
  %171 = vmatpush.msra.mxu0 0.0
  %172 = vmatpush.msra.mxu0 0.0
  %173 = vmatpush.msra.mxu0 0.0
  %v174 = vand.u32 %v28, 4294901760
  %v175 = vsub.f32 %v28, %v174
  %v176 = vand.u32 %v175, 4294901760
  %177 = vmatpush.msra.mxu0 %v176
  %v178 = vand.u32 %v31, 4294901760
  %179 = vmatmul.f32.gmra.mxu0 %v178
  %v180 = vpop.f32.mrf.mxu0
  %v181 = vadd.f32 %v151, %v180
  %v182 = vand.u32 %v34, 4294901760
  %183 = vmatmul.f32.gmra.mxu0 %v182
  %v184 = vpop.f32.mrf.mxu0
  %v185 = vadd.f32 %v157, %v184
  %186 = vdwg.mxu0
  %187 = vmatpush.msra.mxu0 0.0
  %188 = vmatpush.msra.mxu0 0.0
  %189 = vmatpush.msra.mxu0 0.0
  %190 = vmatpush.msra.mxu0 0.0
  %191 = vmatpush.msra.mxu0 0.0
  %192 = vmatpush.msra.mxu0 0.0
  %193 = vmatpush.msra.mxu0 0.0
  %194 = vmatpush.msra.mxu0 0.0
  %195 = vmatpush.msra.mxu0 0.0
  %196 = vmatpush.msra.mxu0 0.0
  %197 = vmatpush.msra.mxu0 0.0
  %198 = vmatpush.msra.mxu0 0.0
  %199 = vmatpush.msra.mxu0 0.0
  %200 = vmatpush.msra.mxu0 0.0
  %201 = vmatpush.msra.mxu0 0.0
  %v202 = vand.u32 %v28, 4294901760
  %203 = vmatpush.msra.mxu0 %v202
  %v204 = vand.u32 %v31, 4294901760
  %205 = vmatmul.f32.gmra.mxu0 %v204
  %v206 = vpop.f32.mrf.mxu0
  %v207 = vadd.f32 %v181, %v206
  %v208 = vand.u32 %v34, 4294901760
  %209 = vmatmul.f32.gmra.mxu0 %v208
  %v210 = vpop.f32.mrf.mxu0
  %v211 = vadd.f32 %v185, %v210
  %212 = vdwg.mxu0
  %v213 = vlaneseq
  %v214 = vand.u32 %v213, 127
  %v215 = vld [vmem:[%s0] sm:$0xff]
  %v216 = vld [vmem:[%s0 + $0x8] sm:$0xff]
  %v217 = vld [vmem:[%s0 + $0x10] sm:$0xff]
  %218 = vset.pattern.permute.xlu0 0
  %219 = vperm.xlu0 %218, %v215
  %v220 = vpop.permute.xlu0 %219
  %221 = vset.pattern.permute.xlu0 0
  %222 = vperm.xlu0 %221, %v216
  %v223 = vpop.permute.xlu0 %222
  %224 = vset.pattern.permute.xlu0 0
  %225 = vperm.xlu0 %224, %v217
  %v226 = vpop.permute.xlu0 %225
  %vm227 = vcmp.eq.s32.totalorder %v214, %v220
  %vm228 = vcmp.eq.s32.totalorder %v214, %v223
  %vm229 = vcmp.eq.s32.totalorder %v214, %v226
  %v230 = vsel %vm227, 1, 0
  %v231 = vsel %vm228, 1, 0
  %v232 = vsel %vm229, 1, 0
  %v233 = vcvt.s32.f32 %v230
  %v234 = vcvt.s32.f32 %v231
  %v235 = vcvt.s32.f32 %v232
  %v236 = vld [vmem:[%s4] sm:$0xff]
  %v237 = vld [vmem:[%s4 + $0x8] sm:$0xff]
  %v238 = vld [vmem:[%s4 + $0x10] sm:$0xff]
  %v239 = vld [vmem:[%s6 + $0x8] sm:$0xf]
  %vm240 = vcmask 31744
  %v242 = vsel %vm240, %v236, 0
  %v245 = vsel %vm240, %v237, 0
  %v248 = vsel %vm240, %v238, 0
  %vm250 = vcmask 1043456
  %v252 = vsel %vm250, %v239, 0
  %254 = vmatpush.msra.mxu0 0.0
  %255 = vmatpush.msra.mxu0 0.0
  %256 = vmatpush.msra.mxu0 0.0
  %257 = vmatpush.msra.mxu0 0.0
  %258 = vmatpush.msra.mxu0 0.0
  %259 = vmatpush.msra.mxu0 0.0
  %260 = vmatpush.msra.mxu0 0.0
  %261 = vmatpush.msra.mxu0 0.0
  %262 = vmatpush.msra.mxu0 0.0
  %263 = vmatpush.msra.mxu0 0.0
  %264 = vmatpush.msra.mxu0 0.0
  %265 = vmatpush.msra.mxu0 0.0
  %266 = vmatpush.msra.mxu0 0.0
  %267 = vmatpush.msra.mxu0 0.0
  %268 = vmatpush.msra.mxu0 0.0
  %v269 = vand.u32 %v252, 4294901760
  %270 = vmatpush.msra.mxu0 %v269
  %v271 = vand.u32 %v242, 4294901760
  %v272 = vsub.f32 %v242, %v271
  %v273 = vand.u32 %v272, 4294901760
  %v274 = vsub.f32 %v272, %v273
  %v275 = vand.u32 %v274, 4294901760
  %276 = vmatmul.f32.gmra.mxu0 %v275
  %v277 = vpop.f32.mrf.mxu0
  %v278 = vadd.f32 0.0, %v277
  %v279 = vand.u32 %v245, 4294901760
  %v280 = vsub.f32 %v245, %v279
  %v281 = vand.u32 %v280, 4294901760
  %v282 = vsub.f32 %v280, %v281
  %v283 = vand.u32 %v282, 4294901760
  %284 = vmatmul.f32.gmra.mxu0 %v283
  %v285 = vpop.f32.mrf.mxu0
  %v286 = vadd.f32 0.0, %v285
  %v287 = vand.u32 %v248, 4294901760
  %v288 = vsub.f32 %v248, %v287
  %v289 = vand.u32 %v288, 4294901760
  %v290 = vsub.f32 %v288, %v289
  %v291 = vand.u32 %v290, 4294901760
  %292 = vmatmul.f32.gmra.mxu0 %v291
  %v293 = vpop.f32.mrf.mxu0
  %v294 = vadd.f32 0.0, %v293
  %295 = vdwg.mxu0
  %296 = vmatpush.msra.mxu0 0.0
  %297 = vmatpush.msra.mxu0 0.0
  %298 = vmatpush.msra.mxu0 0.0
  %299 = vmatpush.msra.mxu0 0.0
  %300 = vmatpush.msra.mxu0 0.0
  %301 = vmatpush.msra.mxu0 0.0
  %302 = vmatpush.msra.mxu0 0.0
  %303 = vmatpush.msra.mxu0 0.0
  %304 = vmatpush.msra.mxu0 0.0
  %305 = vmatpush.msra.mxu0 0.0
  %306 = vmatpush.msra.mxu0 0.0
  %307 = vmatpush.msra.mxu0 0.0
  %308 = vmatpush.msra.mxu0 0.0
  %309 = vmatpush.msra.mxu0 0.0
  %310 = vmatpush.msra.mxu0 0.0
  %v311 = vand.u32 %v252, 4294901760
  %v312 = vsub.f32 %v252, %v311
  %v313 = vand.u32 %v312, 4294901760
  %v314 = vsub.f32 %v312, %v313
  %v315 = vand.u32 %v314, 4294901760
  %316 = vmatpush.msra.mxu0 %v315
  %v317 = vand.u32 %v242, 4294901760
  %318 = vmatmul.f32.gmra.mxu0 %v317
  %v319 = vpop.f32.mrf.mxu0
  %v320 = vadd.f32 %v278, %v319
  %v321 = vand.u32 %v245, 4294901760
  %322 = vmatmul.f32.gmra.mxu0 %v321
  %v323 = vpop.f32.mrf.mxu0
  %v324 = vadd.f32 %v286, %v323
  %v325 = vand.u32 %v248, 4294901760
  %326 = vmatmul.f32.gmra.mxu0 %v325
  %v327 = vpop.f32.mrf.mxu0
  %v328 = vadd.f32 %v294, %v327
  %329 = vdwg.mxu0
  %330 = vmatpush.msra.mxu0 0.0
  %331 = vmatpush.msra.mxu0 0.0
  %332 = vmatpush.msra.mxu0 0.0
  %333 = vmatpush.msra.mxu0 0.0
  %334 = vmatpush.msra.mxu0 0.0
  %335 = vmatpush.msra.mxu0 0.0
  %336 = vmatpush.msra.mxu0 0.0
  %337 = vmatpush.msra.mxu0 0.0
  %338 = vmatpush.msra.mxu0 0.0
  %339 = vmatpush.msra.mxu0 0.0
  %340 = vmatpush.msra.mxu0 0.0
  %341 = vmatpush.msra.mxu0 0.0
  %342 = vmatpush.msra.mxu0 0.0
  %343 = vmatpush.msra.mxu0 0.0
  %344 = vmatpush.msra.mxu0 0.0
  %v345 = vand.u32 %v252, 4294901760
  %v346 = vsub.f32 %v252, %v345
  %347 = vmatpush.msra.mxu0 %v346
  %v348 = vand.u32 %v242, 4294901760
  %v349 = vsub.f32 %v242, %v348
  %350 = vmatmul.f32.gmra.mxu0 %v349
  %v351 = vpop.f32.mrf.mxu0
  %v352 = vadd.f32 %v320, %v351
  %v353 = vand.u32 %v245, 4294901760
  %v354 = vsub.f32 %v245, %v353
  %355 = vmatmul.f32.gmra.mxu0 %v354
  %v356 = vpop.f32.mrf.mxu0
  %v357 = vadd.f32 %v324, %v356
  %v358 = vand.u32 %v248, 4294901760
  %v359 = vsub.f32 %v248, %v358
  %360 = vmatmul.f32.gmra.mxu0 %v359
  %v361 = vpop.f32.mrf.mxu0
  %v362 = vadd.f32 %v328, %v361
  %363 = vdwg.mxu0
  %364 = vmatpush.msra.mxu0 0.0
  %365 = vmatpush.msra.mxu0 0.0
  %366 = vmatpush.msra.mxu0 0.0
  %367 = vmatpush.msra.mxu0 0.0
  %368 = vmatpush.msra.mxu0 0.0
  %369 = vmatpush.msra.mxu0 0.0
  %370 = vmatpush.msra.mxu0 0.0
  %371 = vmatpush.msra.mxu0 0.0
  %372 = vmatpush.msra.mxu0 0.0
  %373 = vmatpush.msra.mxu0 0.0
  %374 = vmatpush.msra.mxu0 0.0
  %375 = vmatpush.msra.mxu0 0.0
  %376 = vmatpush.msra.mxu0 0.0
  %377 = vmatpush.msra.mxu0 0.0
  %378 = vmatpush.msra.mxu0 0.0
  %v379 = vand.u32 %v252, 4294901760
  %380 = vmatpush.msra.mxu0 %v379
  %v381 = vand.u32 %v242, 4294901760
  %v382 = vsub.f32 %v242, %v381
  %v383 = vand.u32 %v382, 4294901760
  %384 = vmatmul.f32.gmra.mxu0 %v383
  %v385 = vpop.f32.mrf.mxu0
  %v386 = vadd.f32 %v352, %v385
  %v387 = vand.u32 %v245, 4294901760
  %v388 = vsub.f32 %v245, %v387
  %v389 = vand.u32 %v388, 4294901760
  %390 = vmatmul.f32.gmra.mxu0 %v389
  %v391 = vpop.f32.mrf.mxu0
  %v392 = vadd.f32 %v357, %v391
  %v393 = vand.u32 %v248, 4294901760
  %v394 = vsub.f32 %v248, %v393
  %v395 = vand.u32 %v394, 4294901760
  %396 = vmatmul.f32.gmra.mxu0 %v395
  %v397 = vpop.f32.mrf.mxu0
  %v398 = vadd.f32 %v362, %v397
  %399 = vdwg.mxu0
  %400 = vmatpush.msra.mxu0 0.0
  %401 = vmatpush.msra.mxu0 0.0
  %402 = vmatpush.msra.mxu0 0.0
  %403 = vmatpush.msra.mxu0 0.0
  %404 = vmatpush.msra.mxu0 0.0
  %405 = vmatpush.msra.mxu0 0.0
  %406 = vmatpush.msra.mxu0 0.0
  %407 = vmatpush.msra.mxu0 0.0
  %408 = vmatpush.msra.mxu0 0.0
  %409 = vmatpush.msra.mxu0 0.0
  %410 = vmatpush.msra.mxu0 0.0
  %411 = vmatpush.msra.mxu0 0.0
  %412 = vmatpush.msra.mxu0 0.0
  %413 = vmatpush.msra.mxu0 0.0
  %414 = vmatpush.msra.mxu0 0.0
  %v415 = vand.u32 %v252, 4294901760
  %v416 = vsub.f32 %v252, %v415
  %v417 = vand.u32 %v416, 4294901760
  %418 = vmatpush.msra.mxu0 %v417
  %v419 = vand.u32 %v242, 4294901760
  %420 = vmatmul.f32.gmra.mxu0 %v419
  %v421 = vpop.f32.mrf.mxu0
  %v422 = vadd.f32 %v386, %v421
  %v423 = vand.u32 %v245, 4294901760
  %424 = vmatmul.f32.gmra.mxu0 %v423
  %v425 = vpop.f32.mrf.mxu0
  %v426 = vadd.f32 %v392, %v425
  %v427 = vand.u32 %v248, 4294901760
  %428 = vmatmul.f32.gmra.mxu0 %v427
  %v429 = vpop.f32.mrf.mxu0
  %v430 = vadd.f32 %v398, %v429
  %431 = vdwg.mxu0
  %432 = vmatpush.msra.mxu0 0.0
  %433 = vmatpush.msra.mxu0 0.0
  %434 = vmatpush.msra.mxu0 0.0
  %435 = vmatpush.msra.mxu0 0.0
  %436 = vmatpush.msra.mxu0 0.0
  %437 = vmatpush.msra.mxu0 0.0
  %438 = vmatpush.msra.mxu0 0.0
  %439 = vmatpush.msra.mxu0 0.0
  %440 = vmatpush.msra.mxu0 0.0
  %441 = vmatpush.msra.mxu0 0.0
  %442 = vmatpush.msra.mxu0 0.0
  %443 = vmatpush.msra.mxu0 0.0
  %444 = vmatpush.msra.mxu0 0.0
  %445 = vmatpush.msra.mxu0 0.0
  %446 = vmatpush.msra.mxu0 0.0
  %v447 = vand.u32 %v252, 4294901760
  %448 = vmatpush.msra.mxu0 %v447
  %v449 = vand.u32 %v242, 4294901760
  %450 = vmatmul.f32.gmra.mxu0 %v449
  %v451 = vpop.f32.mrf.mxu0
  %v452 = vadd.f32 %v422, %v451
  %v453 = vand.u32 %v245, 4294901760
  %454 = vmatmul.f32.gmra.mxu0 %v453
  %v455 = vpop.f32.mrf.mxu0
  %v456 = vadd.f32 %v426, %v455
  %v457 = vand.u32 %v248, 4294901760
  %458 = vmatmul.f32.gmra.mxu0 %v457
  %v459 = vpop.f32.mrf.mxu0
  %v460 = vadd.f32 %v430, %v459
  %461 = vdwg.mxu0
  %vm462 = vcmask 130048
  %v464 = vsel %vm462, %v233, 0
  %v467 = vsel %vm462, %v234, 0
  %v470 = vsel %vm462, %v235, 0
  %472 = vmatpush.msra.mxu0 0.0
  %473 = vmatpush.msra.mxu0 0.0
  %474 = vmatpush.msra.mxu0 0.0
  %475 = vmatpush.msra.mxu0 0.0
  %476 = vmatpush.msra.mxu0 0.0
  %477 = vmatpush.msra.mxu0 0.0
  %478 = vmatpush.msra.mxu0 0.0
  %479 = vmatpush.msra.mxu0 0.0
  %480 = vmatpush.msra.mxu0 0.0
  %481 = vmatpush.msra.mxu0 0.0
  %482 = vmatpush.msra.mxu0 0.0
  %483 = vmatpush.msra.mxu0 0.0
  %484 = vmatpush.msra.mxu0 0.0
  %485 = vmatpush.msra.mxu0 0.0
  %v486 = vand.u32 %v211, 4294901760
  %487 = vmatpush.msra.mxu0 %v486
  %v488 = vand.u32 %v207, 4294901760
  %489 = vmatpush.msra.mxu0 %v488
  %v490 = vand.u32 %v464, 4294901760
  %v491 = vsub.f32 %v464, %v490
  %v492 = vand.u32 %v491, 4294901760
  %v493 = vsub.f32 %v491, %v492
  %v494 = vand.u32 %v493, 4294901760
  %495 = vmatmul.f32.gmra.mxu0 %v494
  %v496 = vpop.f32.mrf.mxu0
  %v497 = vadd.f32 %v452, %v496
  %v498 = vand.u32 %v467, 4294901760
  %v499 = vsub.f32 %v467, %v498
  %v500 = vand.u32 %v499, 4294901760
  %v501 = vsub.f32 %v499, %v500
  %v502 = vand.u32 %v501, 4294901760
  %503 = vmatmul.f32.gmra.mxu0 %v502
  %v504 = vpop.f32.mrf.mxu0
  %v505 = vadd.f32 %v456, %v504
  %v506 = vand.u32 %v470, 4294901760
  %v507 = vsub.f32 %v470, %v506
  %v508 = vand.u32 %v507, 4294901760
  %v509 = vsub.f32 %v507, %v508
  %v510 = vand.u32 %v509, 4294901760
  %511 = vmatmul.f32.gmra.mxu0 %v510
  %v512 = vpop.f32.mrf.mxu0
  %v513 = vadd.f32 %v460, %v512
  %514 = vdwg.mxu0
  %515 = vmatpush.msra.mxu0 0.0
  %516 = vmatpush.msra.mxu0 0.0
  %517 = vmatpush.msra.mxu0 0.0
  %518 = vmatpush.msra.mxu0 0.0
  %519 = vmatpush.msra.mxu0 0.0
  %520 = vmatpush.msra.mxu0 0.0
  %521 = vmatpush.msra.mxu0 0.0
  %522 = vmatpush.msra.mxu0 0.0
  %523 = vmatpush.msra.mxu0 0.0
  %524 = vmatpush.msra.mxu0 0.0
  %525 = vmatpush.msra.mxu0 0.0
  %526 = vmatpush.msra.mxu0 0.0
  %527 = vmatpush.msra.mxu0 0.0
  %528 = vmatpush.msra.mxu0 0.0
  %v529 = vand.u32 %v211, 4294901760
  %v530 = vsub.f32 %v211, %v529
  %v531 = vand.u32 %v530, 4294901760
  %v532 = vsub.f32 %v530, %v531
  %v533 = vand.u32 %v532, 4294901760
  %534 = vmatpush.msra.mxu0 %v533
  %v535 = vand.u32 %v207, 4294901760
  %v536 = vsub.f32 %v207, %v535
  %v537 = vand.u32 %v536, 4294901760
  %v538 = vsub.f32 %v536, %v537
  %v539 = vand.u32 %v538, 4294901760
  %540 = vmatpush.msra.mxu0 %v539
  %v541 = vand.u32 %v464, 4294901760
  %542 = vmatmul.f32.gmra.mxu0 %v541
  %v543 = vpop.f32.mrf.mxu0
  %v544 = vadd.f32 %v497, %v543
  %v545 = vand.u32 %v467, 4294901760
  %546 = vmatmul.f32.gmra.mxu0 %v545
  %v547 = vpop.f32.mrf.mxu0
  %v548 = vadd.f32 %v505, %v547
  %v549 = vand.u32 %v470, 4294901760
  %550 = vmatmul.f32.gmra.mxu0 %v549
  %v551 = vpop.f32.mrf.mxu0
  %v552 = vadd.f32 %v513, %v551
  %553 = vdwg.mxu0
  %554 = vmatpush.msra.mxu0 0.0
  %555 = vmatpush.msra.mxu0 0.0
  %556 = vmatpush.msra.mxu0 0.0
  %557 = vmatpush.msra.mxu0 0.0
  %558 = vmatpush.msra.mxu0 0.0
  %559 = vmatpush.msra.mxu0 0.0
  %560 = vmatpush.msra.mxu0 0.0
  %561 = vmatpush.msra.mxu0 0.0
  %562 = vmatpush.msra.mxu0 0.0
  %563 = vmatpush.msra.mxu0 0.0
  %564 = vmatpush.msra.mxu0 0.0
  %565 = vmatpush.msra.mxu0 0.0
  %566 = vmatpush.msra.mxu0 0.0
  %567 = vmatpush.msra.mxu0 0.0
  %v568 = vand.u32 %v211, 4294901760
  %v569 = vsub.f32 %v211, %v568
  %570 = vmatpush.msra.mxu0 %v569
  %v571 = vand.u32 %v207, 4294901760
  %v572 = vsub.f32 %v207, %v571
  %573 = vmatpush.msra.mxu0 %v572
  %v574 = vand.u32 %v464, 4294901760
  %v575 = vsub.f32 %v464, %v574
  %576 = vmatmul.f32.gmra.mxu0 %v575
  %v577 = vpop.f32.mrf.mxu0
  %v578 = vadd.f32 %v544, %v577
  %v579 = vand.u32 %v467, 4294901760
  %v580 = vsub.f32 %v467, %v579
  %581 = vmatmul.f32.gmra.mxu0 %v580
  %v582 = vpop.f32.mrf.mxu0
  %v583 = vadd.f32 %v548, %v582
  %v584 = vand.u32 %v470, 4294901760
  %v585 = vsub.f32 %v470, %v584
  %586 = vmatmul.f32.gmra.mxu0 %v585
  %v587 = vpop.f32.mrf.mxu0
  %v588 = vadd.f32 %v552, %v587
  %589 = vdwg.mxu0
  %590 = vmatpush.msra.mxu0 0.0
  %591 = vmatpush.msra.mxu0 0.0
  %592 = vmatpush.msra.mxu0 0.0
  %593 = vmatpush.msra.mxu0 0.0
  %594 = vmatpush.msra.mxu0 0.0
  %595 = vmatpush.msra.mxu0 0.0
  %596 = vmatpush.msra.mxu0 0.0
  %597 = vmatpush.msra.mxu0 0.0
  %598 = vmatpush.msra.mxu0 0.0
  %599 = vmatpush.msra.mxu0 0.0
  %600 = vmatpush.msra.mxu0 0.0
  %601 = vmatpush.msra.mxu0 0.0
  %602 = vmatpush.msra.mxu0 0.0
  %603 = vmatpush.msra.mxu0 0.0
  %v604 = vand.u32 %v211, 4294901760
  %605 = vmatpush.msra.mxu0 %v604
  %v606 = vand.u32 %v207, 4294901760
  %607 = vmatpush.msra.mxu0 %v606
  %v608 = vand.u32 %v464, 4294901760
  %v609 = vsub.f32 %v464, %v608
  %v610 = vand.u32 %v609, 4294901760
  %611 = vmatmul.f32.gmra.mxu0 %v610
  %v612 = vpop.f32.mrf.mxu0
  %v613 = vadd.f32 %v578, %v612
  %v614 = vand.u32 %v467, 4294901760
  %v615 = vsub.f32 %v467, %v614
  %v616 = vand.u32 %v615, 4294901760
  %617 = vmatmul.f32.gmra.mxu0 %v616
  %v618 = vpop.f32.mrf.mxu0
  %v619 = vadd.f32 %v583, %v618
  %v620 = vand.u32 %v470, 4294901760
  %v621 = vsub.f32 %v470, %v620
  %v622 = vand.u32 %v621, 4294901760
  %623 = vmatmul.f32.gmra.mxu0 %v622
  %v624 = vpop.f32.mrf.mxu0
  %v625 = vadd.f32 %v588, %v624
  %626 = vdwg.mxu0
  %627 = vmatpush.msra.mxu0 0.0
  %628 = vmatpush.msra.mxu0 0.0
  %629 = vmatpush.msra.mxu0 0.0
  %630 = vmatpush.msra.mxu0 0.0
  %631 = vmatpush.msra.mxu0 0.0
  %632 = vmatpush.msra.mxu0 0.0
  %633 = vmatpush.msra.mxu0 0.0
  %634 = vmatpush.msra.mxu0 0.0
  %635 = vmatpush.msra.mxu0 0.0
  %636 = vmatpush.msra.mxu0 0.0
  %637 = vmatpush.msra.mxu0 0.0
  %638 = vmatpush.msra.mxu0 0.0
  %639 = vmatpush.msra.mxu0 0.0
  %640 = vmatpush.msra.mxu0 0.0
  %v641 = vand.u32 %v211, 4294901760
  %v642 = vsub.f32 %v211, %v641
  %v643 = vand.u32 %v642, 4294901760
  %644 = vmatpush.msra.mxu0 %v643
  %v645 = vand.u32 %v207, 4294901760
  %v646 = vsub.f32 %v207, %v645
  %v647 = vand.u32 %v646, 4294901760
  %648 = vmatpush.msra.mxu0 %v647
  %v649 = vand.u32 %v464, 4294901760
  %650 = vmatmul.f32.gmra.mxu0 %v649
  %v651 = vpop.f32.mrf.mxu0
  %v652 = vadd.f32 %v613, %v651
  %v653 = vand.u32 %v467, 4294901760
  %654 = vmatmul.f32.gmra.mxu0 %v653
  %v655 = vpop.f32.mrf.mxu0
  %v656 = vadd.f32 %v619, %v655
  %v657 = vand.u32 %v470, 4294901760
  %658 = vmatmul.f32.gmra.mxu0 %v657
  %v659 = vpop.f32.mrf.mxu0
  %v660 = vadd.f32 %v625, %v659
  %661 = vdwg.mxu0
  %662 = vmatpush.msra.mxu0 0.0
  %663 = vmatpush.msra.mxu0 0.0
  %664 = vmatpush.msra.mxu0 0.0
  %665 = vmatpush.msra.mxu0 0.0
  %666 = vmatpush.msra.mxu0 0.0
  %667 = vmatpush.msra.mxu0 0.0
  %668 = vmatpush.msra.mxu0 0.0
  %669 = vmatpush.msra.mxu0 0.0
  %670 = vmatpush.msra.mxu0 0.0
  %671 = vmatpush.msra.mxu0 0.0
  %672 = vmatpush.msra.mxu0 0.0
  %673 = vmatpush.msra.mxu0 0.0
  %674 = vmatpush.msra.mxu0 0.0
  %675 = vmatpush.msra.mxu0 0.0
  %v676 = vand.u32 %v211, 4294901760
  %677 = vmatpush.msra.mxu0 %v676
  %v678 = vand.u32 %v207, 4294901760
  %679 = vmatpush.msra.mxu0 %v678
  %v680 = vand.u32 %v464, 4294901760
  %681 = vmatmul.f32.gmra.mxu0 %v680
  %v682 = vpop.f32.mrf.mxu0
  %v683 = vadd.f32 %v652, %v682
  %v684 = vand.u32 %v467, 4294901760
  %685 = vmatmul.f32.gmra.mxu0 %v684
  %v686 = vpop.f32.mrf.mxu0
  %v687 = vadd.f32 %v656, %v686
  %v688 = vand.u32 %v470, 4294901760
  %689 = vmatmul.f32.gmra.mxu0 %v688
  %v690 = vpop.f32.mrf.mxu0
  %v691 = vadd.f32 %v660, %v690
  %692 = vdwg.mxu0
  %v693 = vld [vmem:[%s6 + $0x10] sm:$0x1]
  %v694 = vperm.slane %v693, 0
  %v695 = vadd.f32 %v683, %v694
  %v696 = vadd.f32 %v687, %v694
  %v697 = vadd.f32 %v691, %v694
  %v698 = vmax.f32 %v695, 0.0
  %v699 = vmax.f32 %v696, 0.0
  %v700 = vmax.f32 %v697, 0.0
  %v701 = vld [vmem:[%s6 + $0x18] sm:$0xff]
  %v702 = vld [vmem:[%s6 + $0x20] sm:$0xff]
  %v703 = vld [vmem:[%s6 + $0x28] sm:$0xff]
  %v704 = vld [vmem:[%s6 + $0x30] sm:$0xff]
  %v705 = vld [vmem:[%s6 + $0x38] sm:$0x1]
  %v706 = vperm.slane %v705, 0
  %vm707 = vcmask 261120
  %v709 = vsel %vm707, %v698, 0
  %v712 = vsel %vm707, %v699, 0
  %v715 = vsel %vm707, %v700, 0
  %717 = vmatpush.msra.mxu0 0.0
  %718 = vmatpush.msra.mxu0 0.0
  %719 = vmatpush.msra.mxu0 0.0
  %720 = vmatpush.msra.mxu0 0.0
  %721 = vmatpush.msra.mxu0 0.0
  %722 = vmatpush.msra.mxu0 0.0
  %723 = vmatpush.msra.mxu0 0.0
  %724 = vmatpush.msra.mxu0 0.0
  %725 = vmatpush.msra.mxu0 0.0
  %726 = vmatpush.msra.mxu0 0.0
  %727 = vmatpush.msra.mxu0 0.0
  %728 = vmatpush.msra.mxu0 0.0
  %v729 = vand.u32 %v704, 4294901760
  %730 = vmatpush.msra.mxu0 %v729
  %v731 = vand.u32 %v703, 4294901760
  %732 = vmatpush.msra.mxu0 %v731
  %v733 = vand.u32 %v702, 4294901760
  %734 = vmatpush.msra.mxu0 %v733
  %v735 = vand.u32 %v701, 4294901760
  %736 = vmatpush.msra.mxu0 %v735
  %v737 = vand.u32 %v709, 4294901760
  %v738 = vsub.f32 %v709, %v737
  %v739 = vand.u32 %v738, 4294901760
  %v740 = vsub.f32 %v738, %v739
  %v741 = vand.u32 %v740, 4294901760
  %742 = vmatmul.f32.gmra.mxu0 %v741
  %v743 = vpop.f32.mrf.mxu0
  %v744 = vadd.f32 %v706, %v743
  %v745 = vand.u32 %v712, 4294901760
  %v746 = vsub.f32 %v712, %v745
  %v747 = vand.u32 %v746, 4294901760
  %v748 = vsub.f32 %v746, %v747
  %v749 = vand.u32 %v748, 4294901760
  %750 = vmatmul.f32.gmra.mxu0 %v749
  %v751 = vpop.f32.mrf.mxu0
  %v752 = vadd.f32 %v706, %v751
  %v753 = vand.u32 %v715, 4294901760
  %v754 = vsub.f32 %v715, %v753
  %v755 = vand.u32 %v754, 4294901760
  %v756 = vsub.f32 %v754, %v755
  %v757 = vand.u32 %v756, 4294901760
  %758 = vmatmul.f32.gmra.mxu0 %v757
  %v759 = vpop.f32.mrf.mxu0
  %v760 = vadd.f32 %v706, %v759
  %761 = vdwg.mxu0
  %762 = vmatpush.msra.mxu0 0.0
  %763 = vmatpush.msra.mxu0 0.0
  %764 = vmatpush.msra.mxu0 0.0
  %765 = vmatpush.msra.mxu0 0.0
  %766 = vmatpush.msra.mxu0 0.0
  %767 = vmatpush.msra.mxu0 0.0
  %768 = vmatpush.msra.mxu0 0.0
  %769 = vmatpush.msra.mxu0 0.0
  %770 = vmatpush.msra.mxu0 0.0
  %771 = vmatpush.msra.mxu0 0.0
  %772 = vmatpush.msra.mxu0 0.0
  %773 = vmatpush.msra.mxu0 0.0
  %v774 = vand.u32 %v704, 4294901760
  %v775 = vsub.f32 %v704, %v774
  %v776 = vand.u32 %v775, 4294901760
  %v777 = vsub.f32 %v775, %v776
  %v778 = vand.u32 %v777, 4294901760
  %779 = vmatpush.msra.mxu0 %v778
  %v780 = vand.u32 %v703, 4294901760
  %v781 = vsub.f32 %v703, %v780
  %v782 = vand.u32 %v781, 4294901760
  %v783 = vsub.f32 %v781, %v782
  %v784 = vand.u32 %v783, 4294901760
  %785 = vmatpush.msra.mxu0 %v784
  %v786 = vand.u32 %v702, 4294901760
  %v787 = vsub.f32 %v702, %v786
  %v788 = vand.u32 %v787, 4294901760
  %v789 = vsub.f32 %v787, %v788
  %v790 = vand.u32 %v789, 4294901760
  %791 = vmatpush.msra.mxu0 %v790
  %v792 = vand.u32 %v701, 4294901760
  %v793 = vsub.f32 %v701, %v792
  %v794 = vand.u32 %v793, 4294901760
  %v795 = vsub.f32 %v793, %v794
  %v796 = vand.u32 %v795, 4294901760
  %797 = vmatpush.msra.mxu0 %v796
  %v798 = vand.u32 %v709, 4294901760
  %799 = vmatmul.f32.gmra.mxu0 %v798
  %v800 = vpop.f32.mrf.mxu0
  %v801 = vadd.f32 %v744, %v800
  %v802 = vand.u32 %v712, 4294901760
  %803 = vmatmul.f32.gmra.mxu0 %v802
  %v804 = vpop.f32.mrf.mxu0
  %v805 = vadd.f32 %v752, %v804
  %v806 = vand.u32 %v715, 4294901760
  %807 = vmatmul.f32.gmra.mxu0 %v806
  %v808 = vpop.f32.mrf.mxu0
  %v809 = vadd.f32 %v760, %v808
  %810 = vdwg.mxu0
  %811 = vmatpush.msra.mxu0 0.0
  %812 = vmatpush.msra.mxu0 0.0
  %813 = vmatpush.msra.mxu0 0.0
  %814 = vmatpush.msra.mxu0 0.0
  %815 = vmatpush.msra.mxu0 0.0
  %816 = vmatpush.msra.mxu0 0.0
  %817 = vmatpush.msra.mxu0 0.0
  %818 = vmatpush.msra.mxu0 0.0
  %819 = vmatpush.msra.mxu0 0.0
  %820 = vmatpush.msra.mxu0 0.0
  %821 = vmatpush.msra.mxu0 0.0
  %822 = vmatpush.msra.mxu0 0.0
  %v823 = vand.u32 %v704, 4294901760
  %v824 = vsub.f32 %v704, %v823
  %825 = vmatpush.msra.mxu0 %v824
  %v826 = vand.u32 %v703, 4294901760
  %v827 = vsub.f32 %v703, %v826
  %828 = vmatpush.msra.mxu0 %v827
  %v829 = vand.u32 %v702, 4294901760
  %v830 = vsub.f32 %v702, %v829
  %831 = vmatpush.msra.mxu0 %v830
  %v832 = vand.u32 %v701, 4294901760
  %v833 = vsub.f32 %v701, %v832
  %834 = vmatpush.msra.mxu0 %v833
  %v835 = vand.u32 %v709, 4294901760
  %v836 = vsub.f32 %v709, %v835
  %837 = vmatmul.f32.gmra.mxu0 %v836
  %v838 = vpop.f32.mrf.mxu0
  %v839 = vadd.f32 %v801, %v838
  %v840 = vand.u32 %v712, 4294901760
  %v841 = vsub.f32 %v712, %v840
  %842 = vmatmul.f32.gmra.mxu0 %v841
  %v843 = vpop.f32.mrf.mxu0
  %v844 = vadd.f32 %v805, %v843
  %v845 = vand.u32 %v715, 4294901760
  %v846 = vsub.f32 %v715, %v845
  %847 = vmatmul.f32.gmra.mxu0 %v846
  %v848 = vpop.f32.mrf.mxu0
  %v849 = vadd.f32 %v809, %v848
  %850 = vdwg.mxu0
  %851 = vmatpush.msra.mxu0 0.0
  %852 = vmatpush.msra.mxu0 0.0
  %853 = vmatpush.msra.mxu0 0.0
  %854 = vmatpush.msra.mxu0 0.0
  %855 = vmatpush.msra.mxu0 0.0
  %856 = vmatpush.msra.mxu0 0.0
  %857 = vmatpush.msra.mxu0 0.0
  %858 = vmatpush.msra.mxu0 0.0
  %859 = vmatpush.msra.mxu0 0.0
  %860 = vmatpush.msra.mxu0 0.0
  %861 = vmatpush.msra.mxu0 0.0
  %862 = vmatpush.msra.mxu0 0.0
  %v863 = vand.u32 %v704, 4294901760
  %864 = vmatpush.msra.mxu0 %v863
  %v865 = vand.u32 %v703, 4294901760
  %866 = vmatpush.msra.mxu0 %v865
  %v867 = vand.u32 %v702, 4294901760
  %868 = vmatpush.msra.mxu0 %v867
  %v869 = vand.u32 %v701, 4294901760
  %870 = vmatpush.msra.mxu0 %v869
  %v871 = vand.u32 %v709, 4294901760
  %v872 = vsub.f32 %v709, %v871
  %v873 = vand.u32 %v872, 4294901760
  %874 = vmatmul.f32.gmra.mxu0 %v873
  %v875 = vpop.f32.mrf.mxu0
  %v876 = vadd.f32 %v839, %v875
  %v877 = vand.u32 %v712, 4294901760
  %v878 = vsub.f32 %v712, %v877
  %v879 = vand.u32 %v878, 4294901760
  %880 = vmatmul.f32.gmra.mxu0 %v879
  %v881 = vpop.f32.mrf.mxu0
  %v882 = vadd.f32 %v844, %v881
  %v883 = vand.u32 %v715, 4294901760
  %v884 = vsub.f32 %v715, %v883
  %v885 = vand.u32 %v884, 4294901760
  %886 = vmatmul.f32.gmra.mxu0 %v885
  %v887 = vpop.f32.mrf.mxu0
  %v888 = vadd.f32 %v849, %v887
  %889 = vdwg.mxu0
  %890 = vmatpush.msra.mxu0 0.0
  %891 = vmatpush.msra.mxu0 0.0
  %892 = vmatpush.msra.mxu0 0.0
  %893 = vmatpush.msra.mxu0 0.0
  %894 = vmatpush.msra.mxu0 0.0
  %895 = vmatpush.msra.mxu0 0.0
  %896 = vmatpush.msra.mxu0 0.0
  %897 = vmatpush.msra.mxu0 0.0
  %898 = vmatpush.msra.mxu0 0.0
  %899 = vmatpush.msra.mxu0 0.0
  %900 = vmatpush.msra.mxu0 0.0
  %901 = vmatpush.msra.mxu0 0.0
  %v902 = vand.u32 %v704, 4294901760
  %v903 = vsub.f32 %v704, %v902
  %v904 = vand.u32 %v903, 4294901760
  %905 = vmatpush.msra.mxu0 %v904
  %v906 = vand.u32 %v703, 4294901760
  %v907 = vsub.f32 %v703, %v906
  %v908 = vand.u32 %v907, 4294901760
  %909 = vmatpush.msra.mxu0 %v908
  %v910 = vand.u32 %v702, 4294901760
  %v911 = vsub.f32 %v702, %v910
  %v912 = vand.u32 %v911, 4294901760
  %913 = vmatpush.msra.mxu0 %v912
  %v914 = vand.u32 %v701, 4294901760
  %v915 = vsub.f32 %v701, %v914
  %v916 = vand.u32 %v915, 4294901760
  %917 = vmatpush.msra.mxu0 %v916
  %v918 = vand.u32 %v709, 4294901760
  %919 = vmatmul.f32.gmra.mxu0 %v918
  %v920 = vpop.f32.mrf.mxu0
  %v921 = vadd.f32 %v876, %v920
  %v922 = vand.u32 %v712, 4294901760
  %923 = vmatmul.f32.gmra.mxu0 %v922
  %v924 = vpop.f32.mrf.mxu0
  %v925 = vadd.f32 %v882, %v924
  %v926 = vand.u32 %v715, 4294901760
  %927 = vmatmul.f32.gmra.mxu0 %v926
  %v928 = vpop.f32.mrf.mxu0
  %v929 = vadd.f32 %v888, %v928
  %930 = vdwg.mxu0
  %931 = vmatpush.msra.mxu0 0.0
  %932 = vmatpush.msra.mxu0 0.0
  %933 = vmatpush.msra.mxu0 0.0
  %934 = vmatpush.msra.mxu0 0.0
  %935 = vmatpush.msra.mxu0 0.0
  %936 = vmatpush.msra.mxu0 0.0
  %937 = vmatpush.msra.mxu0 0.0
  %938 = vmatpush.msra.mxu0 0.0
  %939 = vmatpush.msra.mxu0 0.0
  %940 = vmatpush.msra.mxu0 0.0
  %941 = vmatpush.msra.mxu0 0.0
  %942 = vmatpush.msra.mxu0 0.0
  %v943 = vand.u32 %v704, 4294901760
  %944 = vmatpush.msra.mxu0 %v943
  %v945 = vand.u32 %v703, 4294901760
  %946 = vmatpush.msra.mxu0 %v945
  %v947 = vand.u32 %v702, 4294901760
  %948 = vmatpush.msra.mxu0 %v947
  %v949 = vand.u32 %v701, 4294901760
  %950 = vmatpush.msra.mxu0 %v949
  %v951 = vand.u32 %v709, 4294901760
  %952 = vmatmul.f32.gmra.mxu0 %v951
  %v953 = vpop.f32.mrf.mxu0
  %v954 = vadd.f32 %v921, %v953
  %v955 = vand.u32 %v712, 4294901760
  %956 = vmatmul.f32.gmra.mxu0 %v955
  %v957 = vpop.f32.mrf.mxu0
  %v958 = vadd.f32 %v925, %v957
  %v959 = vand.u32 %v715, 4294901760
  %960 = vmatmul.f32.gmra.mxu0 %v959
  %v961 = vpop.f32.mrf.mxu0
  %v962 = vadd.f32 %v929, %v961
  %963 = vdwg.mxu0
  %v964 = vlaneseq
  %v965 = vshrl.u32 %v964, 7
  %v966 = vadd.s32 %v965, 8
  %v967 = vld [vmem:[%s1] sm:$0x1]
  %v968 = vperm.slane %v967, 0
  %vm969 = vcmp.eq.s32.totalorder %v965, %v968
  %vm970 = vcmp.eq.s32.totalorder %v966, %v968
  %v971 = vsel %vm969, 1, 0
  %v972 = vsel %vm970, 1, 0
  %v973 = vcvt.s32.f32 %v971
  %v974 = vcvt.s32.f32 %v972
  %vm975 = vcmask 195584
  %v977 = vsel %vm975, %v973, 0
  %v980 = vsel %vm975, %v974, 0
  %982 = vmatpush.msra.mxu0 0.0
  %983 = vmatpush.msra.mxu0 0.0
  %984 = vmatpush.msra.mxu0 0.0
  %985 = vmatpush.msra.mxu0 0.0
  %986 = vmatpush.msra.mxu0 0.0
  %987 = vmatpush.msra.mxu0 0.0
  %988 = vmatpush.msra.mxu0 0.0
  %989 = vmatpush.msra.mxu0 0.0
  %990 = vmatpush.msra.mxu0 0.0
  %991 = vmatpush.msra.mxu0 0.0
  %992 = vmatpush.msra.mxu0 0.0
  %993 = vmatpush.msra.mxu0 0.0
  %994 = vmatpush.msra.mxu0 0.0
  %v995 = vand.u32 %v962, 4294901760
  %996 = vmatpush.msra.mxu0 %v995
  %v997 = vand.u32 %v958, 4294901760
  %998 = vmatpush.msra.mxu0 %v997
  %v999 = vand.u32 %v954, 4294901760
  %1000 = vmatpush.msra.mxu0 %v999
  %v1001 = vand.u32 %v977, 4294901760
  %v1002 = vsub.f32 %v977, %v1001
  %v1003 = vand.u32 %v1002, 4294901760
  %v1004 = vsub.f32 %v1002, %v1003
  %v1005 = vand.u32 %v1004, 4294901760
  %1006 = vmatmul.f32.gmra.mxu0 %v1005
  %v1007 = vpop.f32.mrf.mxu0
  %v1008 = vadd.f32 0.0, %v1007
  %v1009 = vand.u32 %v980, 4294901760
  %v1010 = vsub.f32 %v980, %v1009
  %v1011 = vand.u32 %v1010, 4294901760
  %v1012 = vsub.f32 %v1010, %v1011
  %v1013 = vand.u32 %v1012, 4294901760
  %1014 = vmatmul.f32.gmra.mxu0 %v1013
  %v1015 = vpop.f32.mrf.mxu0
  %v1016 = vadd.f32 0.0, %v1015
  %1017 = vdwg.mxu0
  %1018 = vmatpush.msra.mxu0 0.0
  %1019 = vmatpush.msra.mxu0 0.0
  %1020 = vmatpush.msra.mxu0 0.0
  %1021 = vmatpush.msra.mxu0 0.0
  %1022 = vmatpush.msra.mxu0 0.0
  %1023 = vmatpush.msra.mxu0 0.0
  %1024 = vmatpush.msra.mxu0 0.0
  %1025 = vmatpush.msra.mxu0 0.0
  %1026 = vmatpush.msra.mxu0 0.0
  %1027 = vmatpush.msra.mxu0 0.0
  %1028 = vmatpush.msra.mxu0 0.0
  %1029 = vmatpush.msra.mxu0 0.0
  %1030 = vmatpush.msra.mxu0 0.0
  %v1031 = vand.u32 %v962, 4294901760
  %v1032 = vsub.f32 %v962, %v1031
  %v1033 = vand.u32 %v1032, 4294901760
  %v1034 = vsub.f32 %v1032, %v1033
  %v1035 = vand.u32 %v1034, 4294901760
  %1036 = vmatpush.msra.mxu0 %v1035
  %v1037 = vand.u32 %v958, 4294901760
  %v1038 = vsub.f32 %v958, %v1037
  %v1039 = vand.u32 %v1038, 4294901760
  %v1040 = vsub.f32 %v1038, %v1039
  %v1041 = vand.u32 %v1040, 4294901760
  %1042 = vmatpush.msra.mxu0 %v1041
  %v1043 = vand.u32 %v954, 4294901760
  %v1044 = vsub.f32 %v954, %v1043
  %v1045 = vand.u32 %v1044, 4294901760
  %v1046 = vsub.f32 %v1044, %v1045
  %v1047 = vand.u32 %v1046, 4294901760
  %1048 = vmatpush.msra.mxu0 %v1047
  %v1049 = vand.u32 %v977, 4294901760
  %1050 = vmatmul.f32.gmra.mxu0 %v1049
  %v1051 = vpop.f32.mrf.mxu0
  %v1052 = vadd.f32 %v1008, %v1051
  %v1053 = vand.u32 %v980, 4294901760
  %1054 = vmatmul.f32.gmra.mxu0 %v1053
  %v1055 = vpop.f32.mrf.mxu0
  %v1056 = vadd.f32 %v1016, %v1055
  %1057 = vdwg.mxu0
  %1058 = vmatpush.msra.mxu0 0.0
  %1059 = vmatpush.msra.mxu0 0.0
  %1060 = vmatpush.msra.mxu0 0.0
  %1061 = vmatpush.msra.mxu0 0.0
  %1062 = vmatpush.msra.mxu0 0.0
  %1063 = vmatpush.msra.mxu0 0.0
  %1064 = vmatpush.msra.mxu0 0.0
  %1065 = vmatpush.msra.mxu0 0.0
  %1066 = vmatpush.msra.mxu0 0.0
  %1067 = vmatpush.msra.mxu0 0.0
  %1068 = vmatpush.msra.mxu0 0.0
  %1069 = vmatpush.msra.mxu0 0.0
  %1070 = vmatpush.msra.mxu0 0.0
  %v1071 = vand.u32 %v962, 4294901760
  %v1072 = vsub.f32 %v962, %v1071
  %1073 = vmatpush.msra.mxu0 %v1072
  %v1074 = vand.u32 %v958, 4294901760
  %v1075 = vsub.f32 %v958, %v1074
  %1076 = vmatpush.msra.mxu0 %v1075
  %v1077 = vand.u32 %v954, 4294901760
  %v1078 = vsub.f32 %v954, %v1077
  %1079 = vmatpush.msra.mxu0 %v1078
  %v1080 = vand.u32 %v977, 4294901760
  %v1081 = vsub.f32 %v977, %v1080
  %1082 = vmatmul.f32.gmra.mxu0 %v1081
  %v1083 = vpop.f32.mrf.mxu0
  %v1084 = vadd.f32 %v1052, %v1083
  %v1085 = vand.u32 %v980, 4294901760
  %v1086 = vsub.f32 %v980, %v1085
  %1087 = vmatmul.f32.gmra.mxu0 %v1086
  %v1088 = vpop.f32.mrf.mxu0
  %v1089 = vadd.f32 %v1056, %v1088
  %1090 = vdwg.mxu0
  %1091 = vmatpush.msra.mxu0 0.0
  %1092 = vmatpush.msra.mxu0 0.0
  %1093 = vmatpush.msra.mxu0 0.0
  %1094 = vmatpush.msra.mxu0 0.0
  %1095 = vmatpush.msra.mxu0 0.0
  %1096 = vmatpush.msra.mxu0 0.0
  %1097 = vmatpush.msra.mxu0 0.0
  %1098 = vmatpush.msra.mxu0 0.0
  %1099 = vmatpush.msra.mxu0 0.0
  %1100 = vmatpush.msra.mxu0 0.0
  %1101 = vmatpush.msra.mxu0 0.0
  %1102 = vmatpush.msra.mxu0 0.0
  %1103 = vmatpush.msra.mxu0 0.0
  %v1104 = vand.u32 %v962, 4294901760
  %1105 = vmatpush.msra.mxu0 %v1104
  %v1106 = vand.u32 %v958, 4294901760
  %1107 = vmatpush.msra.mxu0 %v1106
  %v1108 = vand.u32 %v954, 4294901760
  %1109 = vmatpush.msra.mxu0 %v1108
  %v1110 = vand.u32 %v977, 4294901760
  %v1111 = vsub.f32 %v977, %v1110
  %v1112 = vand.u32 %v1111, 4294901760
  %1113 = vmatmul.f32.gmra.mxu0 %v1112
  %v1114 = vpop.f32.mrf.mxu0
  %v1115 = vadd.f32 %v1084, %v1114
  %v1116 = vand.u32 %v980, 4294901760
  %v1117 = vsub.f32 %v980, %v1116
  %v1118 = vand.u32 %v1117, 4294901760
  %1119 = vmatmul.f32.gmra.mxu0 %v1118
  %v1120 = vpop.f32.mrf.mxu0
  %v1121 = vadd.f32 %v1089, %v1120
  %1122 = vdwg.mxu0
  %1123 = vmatpush.msra.mxu0 0.0
  %1124 = vmatpush.msra.mxu0 0.0
  %1125 = vmatpush.msra.mxu0 0.0
  %1126 = vmatpush.msra.mxu0 0.0
  %1127 = vmatpush.msra.mxu0 0.0
  %1128 = vmatpush.msra.mxu0 0.0
  %1129 = vmatpush.msra.mxu0 0.0
  %1130 = vmatpush.msra.mxu0 0.0
  %1131 = vmatpush.msra.mxu0 0.0
  %1132 = vmatpush.msra.mxu0 0.0
  %1133 = vmatpush.msra.mxu0 0.0
  %1134 = vmatpush.msra.mxu0 0.0
  %1135 = vmatpush.msra.mxu0 0.0
  %v1136 = vand.u32 %v962, 4294901760
  %v1137 = vsub.f32 %v962, %v1136
  %v1138 = vand.u32 %v1137, 4294901760
  %1139 = vmatpush.msra.mxu0 %v1138
  %v1140 = vand.u32 %v958, 4294901760
  %v1141 = vsub.f32 %v958, %v1140
  %v1142 = vand.u32 %v1141, 4294901760
  %1143 = vmatpush.msra.mxu0 %v1142
  %v1144 = vand.u32 %v954, 4294901760
  %v1145 = vsub.f32 %v954, %v1144
  %v1146 = vand.u32 %v1145, 4294901760
  %1147 = vmatpush.msra.mxu0 %v1146
  %v1148 = vand.u32 %v977, 4294901760
  %1149 = vmatmul.f32.gmra.mxu0 %v1148
  %v1150 = vpop.f32.mrf.mxu0
  %v1151 = vadd.f32 %v1115, %v1150
  %v1152 = vand.u32 %v980, 4294901760
  %1153 = vmatmul.f32.gmra.mxu0 %v1152
  %v1154 = vpop.f32.mrf.mxu0
  %v1155 = vadd.f32 %v1121, %v1154
  %1156 = vdwg.mxu0
  %1157 = vmatpush.msra.mxu0 0.0
  %1158 = vmatpush.msra.mxu0 0.0
  %1159 = vmatpush.msra.mxu0 0.0
  %1160 = vmatpush.msra.mxu0 0.0
  %1161 = vmatpush.msra.mxu0 0.0
  %1162 = vmatpush.msra.mxu0 0.0
  %1163 = vmatpush.msra.mxu0 0.0
  %1164 = vmatpush.msra.mxu0 0.0
  %1165 = vmatpush.msra.mxu0 0.0
  %1166 = vmatpush.msra.mxu0 0.0
  %1167 = vmatpush.msra.mxu0 0.0
  %1168 = vmatpush.msra.mxu0 0.0
  %1169 = vmatpush.msra.mxu0 0.0
  %v1170 = vand.u32 %v962, 4294901760
  %1171 = vmatpush.msra.mxu0 %v1170
  %v1172 = vand.u32 %v958, 4294901760
  %1173 = vmatpush.msra.mxu0 %v1172
  %v1174 = vand.u32 %v954, 4294901760
  %1175 = vmatpush.msra.mxu0 %v1174
  %v1176 = vand.u32 %v977, 4294901760
  %1177 = vmatmul.f32.gmra.mxu0 %v1176
  %v1178 = vpop.f32.mrf.mxu0
  %v1179 = vadd.f32 %v1151, %v1178
  %v1180 = vand.u32 %v980, 4294901760
  %1181 = vmatmul.f32.gmra.mxu0 %v1180
  %v1182 = vpop.f32.mrf.mxu0
  %v1183 = vadd.f32 %v1155, %v1182
  %1184 = vdwg.mxu0
  %v1185 = vsel %vm975, %v973, 0.0
  %1186 = vadd.xlane.f32.xlu0 %v1185
  %v1187 = vpop.xlane.xlu0 %1186
  %v1188 = vsel %vm975, %v974, 0.0
  %1189 = vadd.xlane.f32.xlu0 %v1188
  %v1190 = vpop.xlane.xlu0 %1189
  %v1191 = vmax.f32 %v1187, 1.0
  %v1192 = vmax.f32 %v1190, 1.0
  %v1193 = vrcp.pop %v1191
  %v1194 = vmul.f32 %v1191, %v1193
  %v1195 = vsub.f32 1.0, %v1194
  %v1196 = vmul.f32 %v1193, %v1195
  %v1197 = vadd.f32 %v1193, %v1196
  %vm1198 = vweird.f32 %v1191
  %vm1199 = vweird.f32 %v1193
  %vm1200 = vmor %vm1198, %vm1199
  %v1201 = vsel %vm1200, %v1193, %v1197
  %v1202 = vand.u32 2147483647, %v1191
  %vm1203 = vcmp.eq.f32.partialorder %v1202, 8.507059e+37
  %v1204 = vand.u32 %v1191, 2147483648
  %v1205 = vor.u32 1.1754944e-38, %v1204
  %v1206 = vsel %vm1203, %v1205, %v1201
  %v1207 = vmul.f32 %v1179, %v1206
  %v1208 = vrcp.pop %v1192
  %v1209 = vmul.f32 %v1192, %v1208
  %v1210 = vsub.f32 1.0, %v1209
  %v1211 = vmul.f32 %v1208, %v1210
  %v1212 = vadd.f32 %v1208, %v1211
  %vm1213 = vweird.f32 %v1192
  %vm1214 = vweird.f32 %v1208
  %vm1215 = vmor %vm1213, %vm1214
  %v1216 = vsel %vm1215, %v1208, %v1212
  %v1217 = vand.u32 2147483647, %v1192
  %vm1218 = vcmp.eq.f32.partialorder %v1217, 8.507059e+37
  %v1219 = vand.u32 %v1192, 2147483648
  %v1220 = vor.u32 1.1754944e-38, %v1219
  %v1221 = vsel %vm1218, %v1220, %v1216
  %v1222 = vmul.f32 %v1183, %v1221
  %v1223 = vld [vmem:[%s5] sm:$0x3]
  %v1224 = vld [vmem:[%s6 + $0x68] sm:$0x3f]
  %vm1225 = vcmask 48128
  %v1227 = vsel %vm1225, %v1223, 0
  %vm1229 = vcmask 1045504
  %v1231 = vsel %vm1229, %v1224, 0
  %1233 = vmatpush.msra.mxu0 0.0
  %1234 = vmatpush.msra.mxu0 0.0
  %1235 = vmatpush.msra.mxu0 0.0
  %1236 = vmatpush.msra.mxu0 0.0
  %1237 = vmatpush.msra.mxu0 0.0
  %1238 = vmatpush.msra.mxu0 0.0
  %1239 = vmatpush.msra.mxu0 0.0
  %1240 = vmatpush.msra.mxu0 0.0
  %1241 = vmatpush.msra.mxu0 0.0
  %1242 = vmatpush.msra.mxu0 0.0
  %1243 = vmatpush.msra.mxu0 0.0
  %1244 = vmatpush.msra.mxu0 0.0
  %1245 = vmatpush.msra.mxu0 0.0
  %1246 = vmatpush.msra.mxu0 0.0
  %1247 = vmatpush.msra.mxu0 0.0
  %v1248 = vand.u32 %v1231, 4294901760
  %1249 = vmatpush.msra.mxu0 %v1248
  %v1250 = vand.u32 %v1227, 4294901760
  %v1251 = vsub.f32 %v1227, %v1250
  %v1252 = vand.u32 %v1251, 4294901760
  %v1253 = vsub.f32 %v1251, %v1252
  %v1254 = vand.u32 %v1253, 4294901760
  %1255 = vmatmul.f32.gmra.mxu0 %v1254
  %v1256 = vpop.f32.mrf.mxu0
  %v1257 = vadd.f32 0.0, %v1256
  %1258 = vdwg.mxu0
  %1259 = vmatpush.msra.mxu0 0.0
  %1260 = vmatpush.msra.mxu0 0.0
  %1261 = vmatpush.msra.mxu0 0.0
  %1262 = vmatpush.msra.mxu0 0.0
  %1263 = vmatpush.msra.mxu0 0.0
  %1264 = vmatpush.msra.mxu0 0.0
  %1265 = vmatpush.msra.mxu0 0.0
  %1266 = vmatpush.msra.mxu0 0.0
  %1267 = vmatpush.msra.mxu0 0.0
  %1268 = vmatpush.msra.mxu0 0.0
  %1269 = vmatpush.msra.mxu0 0.0
  %1270 = vmatpush.msra.mxu0 0.0
  %1271 = vmatpush.msra.mxu0 0.0
  %1272 = vmatpush.msra.mxu0 0.0
  %1273 = vmatpush.msra.mxu0 0.0
  %v1274 = vand.u32 %v1231, 4294901760
  %v1275 = vsub.f32 %v1231, %v1274
  %v1276 = vand.u32 %v1275, 4294901760
  %v1277 = vsub.f32 %v1275, %v1276
  %v1278 = vand.u32 %v1277, 4294901760
  %1279 = vmatpush.msra.mxu0 %v1278
  %v1280 = vand.u32 %v1227, 4294901760
  %1281 = vmatmul.f32.gmra.mxu0 %v1280
  %v1282 = vpop.f32.mrf.mxu0
  %v1283 = vadd.f32 %v1257, %v1282
  %1284 = vdwg.mxu0
  %1285 = vmatpush.msra.mxu0 0.0
  %1286 = vmatpush.msra.mxu0 0.0
  %1287 = vmatpush.msra.mxu0 0.0
  %1288 = vmatpush.msra.mxu0 0.0
  %1289 = vmatpush.msra.mxu0 0.0
  %1290 = vmatpush.msra.mxu0 0.0
  %1291 = vmatpush.msra.mxu0 0.0
  %1292 = vmatpush.msra.mxu0 0.0
  %1293 = vmatpush.msra.mxu0 0.0
  %1294 = vmatpush.msra.mxu0 0.0
  %1295 = vmatpush.msra.mxu0 0.0
  %1296 = vmatpush.msra.mxu0 0.0
  %1297 = vmatpush.msra.mxu0 0.0
  %1298 = vmatpush.msra.mxu0 0.0
  %1299 = vmatpush.msra.mxu0 0.0
  %v1300 = vand.u32 %v1231, 4294901760
  %v1301 = vsub.f32 %v1231, %v1300
  %1302 = vmatpush.msra.mxu0 %v1301
  %v1303 = vand.u32 %v1227, 4294901760
  %v1304 = vsub.f32 %v1227, %v1303
  %1305 = vmatmul.f32.gmra.mxu0 %v1304
  %v1306 = vpop.f32.mrf.mxu0
  %v1307 = vadd.f32 %v1283, %v1306
  %1308 = vdwg.mxu0
  %1309 = vmatpush.msra.mxu0 0.0
  %1310 = vmatpush.msra.mxu0 0.0
  %1311 = vmatpush.msra.mxu0 0.0
  %1312 = vmatpush.msra.mxu0 0.0
  %1313 = vmatpush.msra.mxu0 0.0
  %1314 = vmatpush.msra.mxu0 0.0
  %1315 = vmatpush.msra.mxu0 0.0
  %1316 = vmatpush.msra.mxu0 0.0
  %1317 = vmatpush.msra.mxu0 0.0
  %1318 = vmatpush.msra.mxu0 0.0
  %1319 = vmatpush.msra.mxu0 0.0
  %1320 = vmatpush.msra.mxu0 0.0
  %1321 = vmatpush.msra.mxu0 0.0
  %1322 = vmatpush.msra.mxu0 0.0
  %1323 = vmatpush.msra.mxu0 0.0
  %v1324 = vand.u32 %v1231, 4294901760
  %1325 = vmatpush.msra.mxu0 %v1324
  %v1326 = vand.u32 %v1227, 4294901760
  %v1327 = vsub.f32 %v1227, %v1326
  %v1328 = vand.u32 %v1327, 4294901760
  %1329 = vmatmul.f32.gmra.mxu0 %v1328
  %v1330 = vpop.f32.mrf.mxu0
  %v1331 = vadd.f32 %v1307, %v1330
  %1332 = vdwg.mxu0
  %1333 = vmatpush.msra.mxu0 0.0
  %1334 = vmatpush.msra.mxu0 0.0
  %1335 = vmatpush.msra.mxu0 0.0
  %1336 = vmatpush.msra.mxu0 0.0
  %1337 = vmatpush.msra.mxu0 0.0
  %1338 = vmatpush.msra.mxu0 0.0
  %1339 = vmatpush.msra.mxu0 0.0
  %1340 = vmatpush.msra.mxu0 0.0
  %1341 = vmatpush.msra.mxu0 0.0
  %1342 = vmatpush.msra.mxu0 0.0
  %1343 = vmatpush.msra.mxu0 0.0
  %1344 = vmatpush.msra.mxu0 0.0
  %1345 = vmatpush.msra.mxu0 0.0
  %1346 = vmatpush.msra.mxu0 0.0
  %1347 = vmatpush.msra.mxu0 0.0
  %v1348 = vand.u32 %v1231, 4294901760
  %v1349 = vsub.f32 %v1231, %v1348
  %v1350 = vand.u32 %v1349, 4294901760
  %1351 = vmatpush.msra.mxu0 %v1350
  %v1352 = vand.u32 %v1227, 4294901760
  %1353 = vmatmul.f32.gmra.mxu0 %v1352
  %v1354 = vpop.f32.mrf.mxu0
  %v1355 = vadd.f32 %v1331, %v1354
  %1356 = vdwg.mxu0
  %1357 = vmatpush.msra.mxu0 0.0
  %1358 = vmatpush.msra.mxu0 0.0
  %1359 = vmatpush.msra.mxu0 0.0
  %1360 = vmatpush.msra.mxu0 0.0
  %1361 = vmatpush.msra.mxu0 0.0
  %1362 = vmatpush.msra.mxu0 0.0
  %1363 = vmatpush.msra.mxu0 0.0
  %1364 = vmatpush.msra.mxu0 0.0
  %1365 = vmatpush.msra.mxu0 0.0
  %1366 = vmatpush.msra.mxu0 0.0
  %1367 = vmatpush.msra.mxu0 0.0
  %1368 = vmatpush.msra.mxu0 0.0
  %1369 = vmatpush.msra.mxu0 0.0
  %1370 = vmatpush.msra.mxu0 0.0
  %1371 = vmatpush.msra.mxu0 0.0
  %v1372 = vand.u32 %v1231, 4294901760
  %1373 = vmatpush.msra.mxu0 %v1372
  %v1374 = vand.u32 %v1227, 4294901760
  %1375 = vmatmul.f32.gmra.mxu0 %v1374
  %v1376 = vpop.f32.mrf.mxu0
  %v1377 = vadd.f32 %v1355, %v1376
  %1378 = vdwg.mxu0
  %v1379 = vld [vmem:[%s2] sm:$0xff]
  %v1380 = vld [vmem:[%s2 + $0x8] sm:$0xff]
  %1381 = vset.pattern.permute.xlu0 0
  %1382 = vperm.xlu0 %1381, %v1379
  %v1383 = vpop.permute.xlu0 %1382
  %1384 = vset.pattern.permute.xlu0 0
  %1385 = vperm.xlu0 %1384, %v1380
  %v1386 = vpop.permute.xlu0 %1385
  %vm1387 = vcmp.eq.s32.totalorder %v214, %v1383
  %vm1388 = vcmp.eq.s32.totalorder %v214, %v1386
  %v1389 = vsel %vm1387, 1, 0
  %v1390 = vsel %vm1388, 1, 0
  %v1391 = vcvt.s32.f32 %v1389
  %v1392 = vcvt.s32.f32 %v1390
  %v1393 = vld [vmem:[%s6 + $0x40] sm:$0xff]
  %v1394 = vld [vmem:[%s6 + $0x48] sm:$0xff]
  %v1395 = vld [vmem:[%s6 + $0x50] sm:$0xff]
  %v1396 = vld [vmem:[%s6 + $0x58] sm:$0xff]
  %v1397 = vld [vmem:[%s6 + $0x60] sm:$0xff]
  %v1399 = vsel %vm707, %v1207, 0
  %v1402 = vsel %vm707, %v1222, 0
  %1404 = vmatpush.msra.mxu0 0.0
  %1405 = vmatpush.msra.mxu0 0.0
  %1406 = vmatpush.msra.mxu0 0.0
  %1407 = vmatpush.msra.mxu0 0.0
  %1408 = vmatpush.msra.mxu0 0.0
  %1409 = vmatpush.msra.mxu0 0.0
  %1410 = vmatpush.msra.mxu0 0.0
  %1411 = vmatpush.msra.mxu0 0.0
  %1412 = vmatpush.msra.mxu0 0.0
  %1413 = vmatpush.msra.mxu0 0.0
  %1414 = vmatpush.msra.mxu0 0.0
  %1415 = vmatpush.msra.mxu0 0.0
  %v1416 = vand.u32 %v1397, 4294901760
  %1417 = vmatpush.msra.mxu0 %v1416
  %v1418 = vand.u32 %v1396, 4294901760
  %1419 = vmatpush.msra.mxu0 %v1418
  %v1420 = vand.u32 %v1395, 4294901760
  %1421 = vmatpush.msra.mxu0 %v1420
  %v1422 = vand.u32 %v1394, 4294901760
  %1423 = vmatpush.msra.mxu0 %v1422
  %v1424 = vand.u32 %v1399, 4294901760
  %v1425 = vsub.f32 %v1399, %v1424
  %v1426 = vand.u32 %v1425, 4294901760
  %v1427 = vsub.f32 %v1425, %v1426
  %v1428 = vand.u32 %v1427, 4294901760
  %1429 = vmatmul.f32.gmra.mxu0 %v1428
  %v1430 = vpop.f32.mrf.mxu0
  %v1431 = vadd.f32 0.0, %v1430
  %v1432 = vand.u32 %v1402, 4294901760
  %v1433 = vsub.f32 %v1402, %v1432
  %v1434 = vand.u32 %v1433, 4294901760
  %v1435 = vsub.f32 %v1433, %v1434
  %v1436 = vand.u32 %v1435, 4294901760
  %1437 = vmatmul.f32.gmra.mxu0 %v1436
  %v1438 = vpop.f32.mrf.mxu0
  %v1439 = vadd.f32 0.0, %v1438
  %1440 = vdwg.mxu0
  %1441 = vmatpush.msra.mxu0 0.0
  %1442 = vmatpush.msra.mxu0 0.0
  %1443 = vmatpush.msra.mxu0 0.0
  %1444 = vmatpush.msra.mxu0 0.0
  %1445 = vmatpush.msra.mxu0 0.0
  %1446 = vmatpush.msra.mxu0 0.0
  %1447 = vmatpush.msra.mxu0 0.0
  %1448 = vmatpush.msra.mxu0 0.0
  %1449 = vmatpush.msra.mxu0 0.0
  %1450 = vmatpush.msra.mxu0 0.0
  %1451 = vmatpush.msra.mxu0 0.0
  %1452 = vmatpush.msra.mxu0 0.0
  %v1453 = vand.u32 %v1397, 4294901760
  %v1454 = vsub.f32 %v1397, %v1453
  %v1455 = vand.u32 %v1454, 4294901760
  %v1456 = vsub.f32 %v1454, %v1455
  %v1457 = vand.u32 %v1456, 4294901760
  %1458 = vmatpush.msra.mxu0 %v1457
  %v1459 = vand.u32 %v1396, 4294901760
  %v1460 = vsub.f32 %v1396, %v1459
  %v1461 = vand.u32 %v1460, 4294901760
  %v1462 = vsub.f32 %v1460, %v1461
  %v1463 = vand.u32 %v1462, 4294901760
  %1464 = vmatpush.msra.mxu0 %v1463
  %v1465 = vand.u32 %v1395, 4294901760
  %v1466 = vsub.f32 %v1395, %v1465
  %v1467 = vand.u32 %v1466, 4294901760
  %v1468 = vsub.f32 %v1466, %v1467
  %v1469 = vand.u32 %v1468, 4294901760
  %1470 = vmatpush.msra.mxu0 %v1469
  %v1471 = vand.u32 %v1394, 4294901760
  %v1472 = vsub.f32 %v1394, %v1471
  %v1473 = vand.u32 %v1472, 4294901760
  %v1474 = vsub.f32 %v1472, %v1473
  %v1475 = vand.u32 %v1474, 4294901760
  %1476 = vmatpush.msra.mxu0 %v1475
  %v1477 = vand.u32 %v1399, 4294901760
  %1478 = vmatmul.f32.gmra.mxu0 %v1477
  %v1479 = vpop.f32.mrf.mxu0
  %v1480 = vadd.f32 %v1431, %v1479
  %v1481 = vand.u32 %v1402, 4294901760
  %1482 = vmatmul.f32.gmra.mxu0 %v1481
  %v1483 = vpop.f32.mrf.mxu0
  %v1484 = vadd.f32 %v1439, %v1483
  %1485 = vdwg.mxu0
  %1486 = vmatpush.msra.mxu0 0.0
  %1487 = vmatpush.msra.mxu0 0.0
  %1488 = vmatpush.msra.mxu0 0.0
  %1489 = vmatpush.msra.mxu0 0.0
  %1490 = vmatpush.msra.mxu0 0.0
  %1491 = vmatpush.msra.mxu0 0.0
  %1492 = vmatpush.msra.mxu0 0.0
  %1493 = vmatpush.msra.mxu0 0.0
  %1494 = vmatpush.msra.mxu0 0.0
  %1495 = vmatpush.msra.mxu0 0.0
  %1496 = vmatpush.msra.mxu0 0.0
  %1497 = vmatpush.msra.mxu0 0.0
  %v1498 = vand.u32 %v1397, 4294901760
  %v1499 = vsub.f32 %v1397, %v1498
  %1500 = vmatpush.msra.mxu0 %v1499
  %v1501 = vand.u32 %v1396, 4294901760
  %v1502 = vsub.f32 %v1396, %v1501
  %1503 = vmatpush.msra.mxu0 %v1502
  %v1504 = vand.u32 %v1395, 4294901760
  %v1505 = vsub.f32 %v1395, %v1504
  %1506 = vmatpush.msra.mxu0 %v1505
  %v1507 = vand.u32 %v1394, 4294901760
  %v1508 = vsub.f32 %v1394, %v1507
  %1509 = vmatpush.msra.mxu0 %v1508
  %v1510 = vand.u32 %v1399, 4294901760
  %v1511 = vsub.f32 %v1399, %v1510
  %1512 = vmatmul.f32.gmra.mxu0 %v1511
  %v1513 = vpop.f32.mrf.mxu0
  %v1514 = vadd.f32 %v1480, %v1513
  %v1515 = vand.u32 %v1402, 4294901760
  %v1516 = vsub.f32 %v1402, %v1515
  %1517 = vmatmul.f32.gmra.mxu0 %v1516
  %v1518 = vpop.f32.mrf.mxu0
  %v1519 = vadd.f32 %v1484, %v1518
  %1520 = vdwg.mxu0
  %1521 = vmatpush.msra.mxu0 0.0
  %1522 = vmatpush.msra.mxu0 0.0
  %1523 = vmatpush.msra.mxu0 0.0
  %1524 = vmatpush.msra.mxu0 0.0
  %1525 = vmatpush.msra.mxu0 0.0
  %1526 = vmatpush.msra.mxu0 0.0
  %1527 = vmatpush.msra.mxu0 0.0
  %1528 = vmatpush.msra.mxu0 0.0
  %1529 = vmatpush.msra.mxu0 0.0
  %1530 = vmatpush.msra.mxu0 0.0
  %1531 = vmatpush.msra.mxu0 0.0
  %1532 = vmatpush.msra.mxu0 0.0
  %v1533 = vand.u32 %v1397, 4294901760
  %1534 = vmatpush.msra.mxu0 %v1533
  %v1535 = vand.u32 %v1396, 4294901760
  %1536 = vmatpush.msra.mxu0 %v1535
  %v1537 = vand.u32 %v1395, 4294901760
  %1538 = vmatpush.msra.mxu0 %v1537
  %v1539 = vand.u32 %v1394, 4294901760
  %1540 = vmatpush.msra.mxu0 %v1539
  %v1541 = vand.u32 %v1399, 4294901760
  %v1542 = vsub.f32 %v1399, %v1541
  %v1543 = vand.u32 %v1542, 4294901760
  %1544 = vmatmul.f32.gmra.mxu0 %v1543
  %v1545 = vpop.f32.mrf.mxu0
  %v1546 = vadd.f32 %v1514, %v1545
  %v1547 = vand.u32 %v1402, 4294901760
  %v1548 = vsub.f32 %v1402, %v1547
  %v1549 = vand.u32 %v1548, 4294901760
  %1550 = vmatmul.f32.gmra.mxu0 %v1549
  %v1551 = vpop.f32.mrf.mxu0
  %v1552 = vadd.f32 %v1519, %v1551
  %1553 = vdwg.mxu0
  %1554 = vmatpush.msra.mxu0 0.0
  %1555 = vmatpush.msra.mxu0 0.0
  %1556 = vmatpush.msra.mxu0 0.0
  %1557 = vmatpush.msra.mxu0 0.0
  %1558 = vmatpush.msra.mxu0 0.0
  %1559 = vmatpush.msra.mxu0 0.0
  %1560 = vmatpush.msra.mxu0 0.0
  %1561 = vmatpush.msra.mxu0 0.0
  %1562 = vmatpush.msra.mxu0 0.0
  %1563 = vmatpush.msra.mxu0 0.0
  %1564 = vmatpush.msra.mxu0 0.0
  %1565 = vmatpush.msra.mxu0 0.0
  %v1566 = vand.u32 %v1397, 4294901760
  %v1567 = vsub.f32 %v1397, %v1566
  %v1568 = vand.u32 %v1567, 4294901760
  %1569 = vmatpush.msra.mxu0 %v1568
  %v1570 = vand.u32 %v1396, 4294901760
  %v1571 = vsub.f32 %v1396, %v1570
  %v1572 = vand.u32 %v1571, 4294901760
  %1573 = vmatpush.msra.mxu0 %v1572
  %v1574 = vand.u32 %v1395, 4294901760
  %v1575 = vsub.f32 %v1395, %v1574
  %v1576 = vand.u32 %v1575, 4294901760
  %1577 = vmatpush.msra.mxu0 %v1576
  %v1578 = vand.u32 %v1394, 4294901760
  %v1579 = vsub.f32 %v1394, %v1578
  %v1580 = vand.u32 %v1579, 4294901760
  %1581 = vmatpush.msra.mxu0 %v1580
  %v1582 = vand.u32 %v1399, 4294901760
  %1583 = vmatmul.f32.gmra.mxu0 %v1582
  %v1584 = vpop.f32.mrf.mxu0
  %v1585 = vadd.f32 %v1546, %v1584
  %v1586 = vand.u32 %v1402, 4294901760
  %1587 = vmatmul.f32.gmra.mxu0 %v1586
  %v1588 = vpop.f32.mrf.mxu0
  %v1589 = vadd.f32 %v1552, %v1588
  %1590 = vdwg.mxu0
  %1591 = vmatpush.msra.mxu0 0.0
  %1592 = vmatpush.msra.mxu0 0.0
  %1593 = vmatpush.msra.mxu0 0.0
  %1594 = vmatpush.msra.mxu0 0.0
  %1595 = vmatpush.msra.mxu0 0.0
  %1596 = vmatpush.msra.mxu0 0.0
  %1597 = vmatpush.msra.mxu0 0.0
  %1598 = vmatpush.msra.mxu0 0.0
  %1599 = vmatpush.msra.mxu0 0.0
  %1600 = vmatpush.msra.mxu0 0.0
  %1601 = vmatpush.msra.mxu0 0.0
  %1602 = vmatpush.msra.mxu0 0.0
  %v1603 = vand.u32 %v1397, 4294901760
  %1604 = vmatpush.msra.mxu0 %v1603
  %v1605 = vand.u32 %v1396, 4294901760
  %1606 = vmatpush.msra.mxu0 %v1605
  %v1607 = vand.u32 %v1395, 4294901760
  %1608 = vmatpush.msra.mxu0 %v1607
  %v1609 = vand.u32 %v1394, 4294901760
  %1610 = vmatpush.msra.mxu0 %v1609
  %v1611 = vand.u32 %v1399, 4294901760
  %1612 = vmatmul.f32.gmra.mxu0 %v1611
  %v1613 = vpop.f32.mrf.mxu0
  %v1614 = vadd.f32 %v1585, %v1613
  %v1615 = vand.u32 %v1402, 4294901760
  %1616 = vmatmul.f32.gmra.mxu0 %v1615
  %v1617 = vpop.f32.mrf.mxu0
  %v1618 = vadd.f32 %v1589, %v1617
  %1619 = vdwg.mxu0
  %1620 = vmatpush.msra.mxu0 0.0
  %1621 = vmatpush.msra.mxu0 0.0
  %1622 = vmatpush.msra.mxu0 0.0
  %1623 = vmatpush.msra.mxu0 0.0
  %1624 = vmatpush.msra.mxu0 0.0
  %1625 = vmatpush.msra.mxu0 0.0
  %1626 = vmatpush.msra.mxu0 0.0
  %1627 = vmatpush.msra.mxu0 0.0
  %1628 = vmatpush.msra.mxu0 0.0
  %1629 = vmatpush.msra.mxu0 0.0
  %1630 = vmatpush.msra.mxu0 0.0
  %1631 = vmatpush.msra.mxu0 0.0
  %1632 = vmatpush.msra.mxu0 0.0
  %1633 = vmatpush.msra.mxu0 0.0
  %1634 = vmatpush.msra.mxu0 0.0
  %v1635 = vand.u32 %v1393, 4294901760
  %1636 = vmatpush.msra.mxu0 %v1635
  %v1637 = vand.u32 %v31, 4294901760
  %v1638 = vsub.f32 %v31, %v1637
  %v1639 = vand.u32 %v1638, 4294901760
  %v1640 = vsub.f32 %v1638, %v1639
  %v1641 = vand.u32 %v1640, 4294901760
  %1642 = vmatmul.f32.gmra.mxu0 %v1641
  %v1643 = vpop.f32.mrf.mxu0
  %v1644 = vadd.f32 %v1614, %v1643
  %v1645 = vand.u32 %v34, 4294901760
  %v1646 = vsub.f32 %v34, %v1645
  %v1647 = vand.u32 %v1646, 4294901760
  %v1648 = vsub.f32 %v1646, %v1647
  %v1649 = vand.u32 %v1648, 4294901760
  %1650 = vmatmul.f32.gmra.mxu0 %v1649
  %v1651 = vpop.f32.mrf.mxu0
  %v1652 = vadd.f32 %v1618, %v1651
  %1653 = vdwg.mxu0
  %1654 = vmatpush.msra.mxu0 0.0
  %1655 = vmatpush.msra.mxu0 0.0
  %1656 = vmatpush.msra.mxu0 0.0
  %1657 = vmatpush.msra.mxu0 0.0
  %1658 = vmatpush.msra.mxu0 0.0
  %1659 = vmatpush.msra.mxu0 0.0
  %1660 = vmatpush.msra.mxu0 0.0
  %1661 = vmatpush.msra.mxu0 0.0
  %1662 = vmatpush.msra.mxu0 0.0
  %1663 = vmatpush.msra.mxu0 0.0
  %1664 = vmatpush.msra.mxu0 0.0
  %1665 = vmatpush.msra.mxu0 0.0
  %1666 = vmatpush.msra.mxu0 0.0
  %1667 = vmatpush.msra.mxu0 0.0
  %1668 = vmatpush.msra.mxu0 0.0
  %v1669 = vand.u32 %v1393, 4294901760
  %v1670 = vsub.f32 %v1393, %v1669
  %v1671 = vand.u32 %v1670, 4294901760
  %v1672 = vsub.f32 %v1670, %v1671
  %v1673 = vand.u32 %v1672, 4294901760
  %1674 = vmatpush.msra.mxu0 %v1673
  %v1675 = vand.u32 %v31, 4294901760
  %1676 = vmatmul.f32.gmra.mxu0 %v1675
  %v1677 = vpop.f32.mrf.mxu0
  %v1678 = vadd.f32 %v1644, %v1677
  %v1679 = vand.u32 %v34, 4294901760
  %1680 = vmatmul.f32.gmra.mxu0 %v1679
  %v1681 = vpop.f32.mrf.mxu0
  %v1682 = vadd.f32 %v1652, %v1681
  %1683 = vdwg.mxu0
  %1684 = vmatpush.msra.mxu0 0.0
  %1685 = vmatpush.msra.mxu0 0.0
  %1686 = vmatpush.msra.mxu0 0.0
  %1687 = vmatpush.msra.mxu0 0.0
  %1688 = vmatpush.msra.mxu0 0.0
  %1689 = vmatpush.msra.mxu0 0.0
  %1690 = vmatpush.msra.mxu0 0.0
  %1691 = vmatpush.msra.mxu0 0.0
  %1692 = vmatpush.msra.mxu0 0.0
  %1693 = vmatpush.msra.mxu0 0.0
  %1694 = vmatpush.msra.mxu0 0.0
  %1695 = vmatpush.msra.mxu0 0.0
  %1696 = vmatpush.msra.mxu0 0.0
  %1697 = vmatpush.msra.mxu0 0.0
  %1698 = vmatpush.msra.mxu0 0.0
  %v1699 = vand.u32 %v1393, 4294901760
  %v1700 = vsub.f32 %v1393, %v1699
  %1701 = vmatpush.msra.mxu0 %v1700
  %v1702 = vand.u32 %v31, 4294901760
  %v1703 = vsub.f32 %v31, %v1702
  %1704 = vmatmul.f32.gmra.mxu0 %v1703
  %v1705 = vpop.f32.mrf.mxu0
  %v1706 = vadd.f32 %v1678, %v1705
  %v1707 = vand.u32 %v34, 4294901760
  %v1708 = vsub.f32 %v34, %v1707
  %1709 = vmatmul.f32.gmra.mxu0 %v1708
  %v1710 = vpop.f32.mrf.mxu0
  %v1711 = vadd.f32 %v1682, %v1710
  %1712 = vdwg.mxu0
  %1713 = vmatpush.msra.mxu0 0.0
  %1714 = vmatpush.msra.mxu0 0.0
  %1715 = vmatpush.msra.mxu0 0.0
  %1716 = vmatpush.msra.mxu0 0.0
  %1717 = vmatpush.msra.mxu0 0.0
  %1718 = vmatpush.msra.mxu0 0.0
  %1719 = vmatpush.msra.mxu0 0.0
  %1720 = vmatpush.msra.mxu0 0.0
  %1721 = vmatpush.msra.mxu0 0.0
  %1722 = vmatpush.msra.mxu0 0.0
  %1723 = vmatpush.msra.mxu0 0.0
  %1724 = vmatpush.msra.mxu0 0.0
  %1725 = vmatpush.msra.mxu0 0.0
  %1726 = vmatpush.msra.mxu0 0.0
  %1727 = vmatpush.msra.mxu0 0.0
  %v1728 = vand.u32 %v1393, 4294901760
  %1729 = vmatpush.msra.mxu0 %v1728
  %v1730 = vand.u32 %v31, 4294901760
  %v1731 = vsub.f32 %v31, %v1730
  %v1732 = vand.u32 %v1731, 4294901760
  %1733 = vmatmul.f32.gmra.mxu0 %v1732
  %v1734 = vpop.f32.mrf.mxu0
  %v1735 = vadd.f32 %v1706, %v1734
  %v1736 = vand.u32 %v34, 4294901760
  %v1737 = vsub.f32 %v34, %v1736
  %v1738 = vand.u32 %v1737, 4294901760
  %1739 = vmatmul.f32.gmra.mxu0 %v1738
  %v1740 = vpop.f32.mrf.mxu0
  %v1741 = vadd.f32 %v1711, %v1740
  %1742 = vdwg.mxu0
  %1743 = vmatpush.msra.mxu0 0.0
  %1744 = vmatpush.msra.mxu0 0.0
  %1745 = vmatpush.msra.mxu0 0.0
  %1746 = vmatpush.msra.mxu0 0.0
  %1747 = vmatpush.msra.mxu0 0.0
  %1748 = vmatpush.msra.mxu0 0.0
  %1749 = vmatpush.msra.mxu0 0.0
  %1750 = vmatpush.msra.mxu0 0.0
  %1751 = vmatpush.msra.mxu0 0.0
  %1752 = vmatpush.msra.mxu0 0.0
  %1753 = vmatpush.msra.mxu0 0.0
  %1754 = vmatpush.msra.mxu0 0.0
  %1755 = vmatpush.msra.mxu0 0.0
  %1756 = vmatpush.msra.mxu0 0.0
  %1757 = vmatpush.msra.mxu0 0.0
  %v1758 = vand.u32 %v1393, 4294901760
  %v1759 = vsub.f32 %v1393, %v1758
  %v1760 = vand.u32 %v1759, 4294901760
  %1761 = vmatpush.msra.mxu0 %v1760
  %v1762 = vand.u32 %v31, 4294901760
  %1763 = vmatmul.f32.gmra.mxu0 %v1762
  %v1764 = vpop.f32.mrf.mxu0
  %v1765 = vadd.f32 %v1735, %v1764
  %v1766 = vand.u32 %v34, 4294901760
  %1767 = vmatmul.f32.gmra.mxu0 %v1766
  %v1768 = vpop.f32.mrf.mxu0
  %v1769 = vadd.f32 %v1741, %v1768
  %1770 = vdwg.mxu0
  %1771 = vmatpush.msra.mxu0 0.0
  %1772 = vmatpush.msra.mxu0 0.0
  %1773 = vmatpush.msra.mxu0 0.0
  %1774 = vmatpush.msra.mxu0 0.0
  %1775 = vmatpush.msra.mxu0 0.0
  %1776 = vmatpush.msra.mxu0 0.0
  %1777 = vmatpush.msra.mxu0 0.0
  %1778 = vmatpush.msra.mxu0 0.0
  %1779 = vmatpush.msra.mxu0 0.0
  %1780 = vmatpush.msra.mxu0 0.0
  %1781 = vmatpush.msra.mxu0 0.0
  %1782 = vmatpush.msra.mxu0 0.0
  %1783 = vmatpush.msra.mxu0 0.0
  %1784 = vmatpush.msra.mxu0 0.0
  %1785 = vmatpush.msra.mxu0 0.0
  %v1786 = vand.u32 %v1393, 4294901760
  %1787 = vmatpush.msra.mxu0 %v1786
  %v1788 = vand.u32 %v31, 4294901760
  %1789 = vmatmul.f32.gmra.mxu0 %v1788
  %v1790 = vpop.f32.mrf.mxu0
  %v1791 = vadd.f32 %v1765, %v1790
  %v1792 = vand.u32 %v34, 4294901760
  %1793 = vmatmul.f32.gmra.mxu0 %v1792
  %v1794 = vpop.f32.mrf.mxu0
  %v1795 = vadd.f32 %v1769, %v1794
  %1796 = vdwg.mxu0
  %vm1797 = vcmask 15360
  %v1799 = vsel %vm1797, %v1391, 0
  %v1802 = vsel %vm1797, %v1392, 0
  %vm1804 = vcmask 1041408
  %v1806 = vsel %vm1804, %v1377, 0
  %1808 = vmatpush.msra.mxu0 0.0
  %1809 = vmatpush.msra.mxu0 0.0
  %1810 = vmatpush.msra.mxu0 0.0
  %1811 = vmatpush.msra.mxu0 0.0
  %1812 = vmatpush.msra.mxu0 0.0
  %1813 = vmatpush.msra.mxu0 0.0
  %1814 = vmatpush.msra.mxu0 0.0
  %1815 = vmatpush.msra.mxu0 0.0
  %1816 = vmatpush.msra.mxu0 0.0
  %1817 = vmatpush.msra.mxu0 0.0
  %1818 = vmatpush.msra.mxu0 0.0
  %1819 = vmatpush.msra.mxu0 0.0
  %1820 = vmatpush.msra.mxu0 0.0
  %1821 = vmatpush.msra.mxu0 0.0
  %1822 = vmatpush.msra.mxu0 0.0
  %v1823 = vand.u32 %v1806, 4294901760
  %1824 = vmatpush.msra.mxu0 %v1823
  %v1825 = vand.u32 %v1799, 4294901760
  %v1826 = vsub.f32 %v1799, %v1825
  %v1827 = vand.u32 %v1826, 4294901760
  %v1828 = vsub.f32 %v1826, %v1827
  %v1829 = vand.u32 %v1828, 4294901760
  %1830 = vmatmul.f32.gmra.mxu0 %v1829
  %v1831 = vpop.f32.mrf.mxu0
  %v1832 = vadd.f32 0.0, %v1831
  %v1833 = vand.u32 %v1802, 4294901760
  %v1834 = vsub.f32 %v1802, %v1833
  %v1835 = vand.u32 %v1834, 4294901760
  %v1836 = vsub.f32 %v1834, %v1835
  %v1837 = vand.u32 %v1836, 4294901760
  %1838 = vmatmul.f32.gmra.mxu0 %v1837
  %v1839 = vpop.f32.mrf.mxu0
  %v1840 = vadd.f32 0.0, %v1839
  %1841 = vdwg.mxu0
  %1842 = vmatpush.msra.mxu0 0.0
  %1843 = vmatpush.msra.mxu0 0.0
  %1844 = vmatpush.msra.mxu0 0.0
  %1845 = vmatpush.msra.mxu0 0.0
  %1846 = vmatpush.msra.mxu0 0.0
  %1847 = vmatpush.msra.mxu0 0.0
  %1848 = vmatpush.msra.mxu0 0.0
  %1849 = vmatpush.msra.mxu0 0.0
  %1850 = vmatpush.msra.mxu0 0.0
  %1851 = vmatpush.msra.mxu0 0.0
  %1852 = vmatpush.msra.mxu0 0.0
  %1853 = vmatpush.msra.mxu0 0.0
  %1854 = vmatpush.msra.mxu0 0.0
  %1855 = vmatpush.msra.mxu0 0.0
  %1856 = vmatpush.msra.mxu0 0.0
  %v1857 = vand.u32 %v1806, 4294901760
  %v1858 = vsub.f32 %v1806, %v1857
  %v1859 = vand.u32 %v1858, 4294901760
  %v1860 = vsub.f32 %v1858, %v1859
  %v1861 = vand.u32 %v1860, 4294901760
  %1862 = vmatpush.msra.mxu0 %v1861
  %v1863 = vand.u32 %v1799, 4294901760
  %1864 = vmatmul.f32.gmra.mxu0 %v1863
  %v1865 = vpop.f32.mrf.mxu0
  %v1866 = vadd.f32 %v1832, %v1865
  %v1867 = vand.u32 %v1802, 4294901760
  %1868 = vmatmul.f32.gmra.mxu0 %v1867
  %v1869 = vpop.f32.mrf.mxu0
  %v1870 = vadd.f32 %v1840, %v1869
  %1871 = vdwg.mxu0
  %1872 = vmatpush.msra.mxu0 0.0
  %1873 = vmatpush.msra.mxu0 0.0
  %1874 = vmatpush.msra.mxu0 0.0
  %1875 = vmatpush.msra.mxu0 0.0
  %1876 = vmatpush.msra.mxu0 0.0
  %1877 = vmatpush.msra.mxu0 0.0
  %1878 = vmatpush.msra.mxu0 0.0
  %1879 = vmatpush.msra.mxu0 0.0
  %1880 = vmatpush.msra.mxu0 0.0
  %1881 = vmatpush.msra.mxu0 0.0
  %1882 = vmatpush.msra.mxu0 0.0
  %1883 = vmatpush.msra.mxu0 0.0
  %1884 = vmatpush.msra.mxu0 0.0
  %1885 = vmatpush.msra.mxu0 0.0
  %1886 = vmatpush.msra.mxu0 0.0
  %v1887 = vand.u32 %v1806, 4294901760
  %v1888 = vsub.f32 %v1806, %v1887
  %1889 = vmatpush.msra.mxu0 %v1888
  %v1890 = vand.u32 %v1799, 4294901760
  %v1891 = vsub.f32 %v1799, %v1890
  %1892 = vmatmul.f32.gmra.mxu0 %v1891
  %v1893 = vpop.f32.mrf.mxu0
  %v1894 = vadd.f32 %v1866, %v1893
  %v1895 = vand.u32 %v1802, 4294901760
  %v1896 = vsub.f32 %v1802, %v1895
  %1897 = vmatmul.f32.gmra.mxu0 %v1896
  %v1898 = vpop.f32.mrf.mxu0
  %v1899 = vadd.f32 %v1870, %v1898
  %1900 = vdwg.mxu0
  %1901 = vmatpush.msra.mxu0 0.0
  %1902 = vmatpush.msra.mxu0 0.0
  %1903 = vmatpush.msra.mxu0 0.0
  %1904 = vmatpush.msra.mxu0 0.0
  %1905 = vmatpush.msra.mxu0 0.0
  %1906 = vmatpush.msra.mxu0 0.0
  %1907 = vmatpush.msra.mxu0 0.0
  %1908 = vmatpush.msra.mxu0 0.0
  %1909 = vmatpush.msra.mxu0 0.0
  %1910 = vmatpush.msra.mxu0 0.0
  %1911 = vmatpush.msra.mxu0 0.0
  %1912 = vmatpush.msra.mxu0 0.0
  %1913 = vmatpush.msra.mxu0 0.0
  %1914 = vmatpush.msra.mxu0 0.0
  %1915 = vmatpush.msra.mxu0 0.0
  %v1916 = vand.u32 %v1806, 4294901760
  %1917 = vmatpush.msra.mxu0 %v1916
  %v1918 = vand.u32 %v1799, 4294901760
  %v1919 = vsub.f32 %v1799, %v1918
  %v1920 = vand.u32 %v1919, 4294901760
  %1921 = vmatmul.f32.gmra.mxu0 %v1920
  %v1922 = vpop.f32.mrf.mxu0
  %v1923 = vadd.f32 %v1894, %v1922
  %v1924 = vand.u32 %v1802, 4294901760
  %v1925 = vsub.f32 %v1802, %v1924
  %v1926 = vand.u32 %v1925, 4294901760
  %1927 = vmatmul.f32.gmra.mxu0 %v1926
  %v1928 = vpop.f32.mrf.mxu0
  %v1929 = vadd.f32 %v1899, %v1928
  %1930 = vdwg.mxu0
  %1931 = vmatpush.msra.mxu0 0.0
  %1932 = vmatpush.msra.mxu0 0.0
  %1933 = vmatpush.msra.mxu0 0.0
  %1934 = vmatpush.msra.mxu0 0.0
  %1935 = vmatpush.msra.mxu0 0.0
  %1936 = vmatpush.msra.mxu0 0.0
  %1937 = vmatpush.msra.mxu0 0.0
  %1938 = vmatpush.msra.mxu0 0.0
  %1939 = vmatpush.msra.mxu0 0.0
  %1940 = vmatpush.msra.mxu0 0.0
  %1941 = vmatpush.msra.mxu0 0.0
  %1942 = vmatpush.msra.mxu0 0.0
  %1943 = vmatpush.msra.mxu0 0.0
  %1944 = vmatpush.msra.mxu0 0.0
  %1945 = vmatpush.msra.mxu0 0.0
  %v1946 = vand.u32 %v1806, 4294901760
  %v1947 = vsub.f32 %v1806, %v1946
  %v1948 = vand.u32 %v1947, 4294901760
  %1949 = vmatpush.msra.mxu0 %v1948
  %v1950 = vand.u32 %v1799, 4294901760
  %1951 = vmatmul.f32.gmra.mxu0 %v1950
  %v1952 = vpop.f32.mrf.mxu0
  %v1953 = vadd.f32 %v1923, %v1952
  %v1954 = vand.u32 %v1802, 4294901760
  %1955 = vmatmul.f32.gmra.mxu0 %v1954
  %v1956 = vpop.f32.mrf.mxu0
  %v1957 = vadd.f32 %v1929, %v1956
  %1958 = vdwg.mxu0
  %1959 = vmatpush.msra.mxu0 0.0
  %1960 = vmatpush.msra.mxu0 0.0
  %1961 = vmatpush.msra.mxu0 0.0
  %1962 = vmatpush.msra.mxu0 0.0
  %1963 = vmatpush.msra.mxu0 0.0
  %1964 = vmatpush.msra.mxu0 0.0
  %1965 = vmatpush.msra.mxu0 0.0
  %1966 = vmatpush.msra.mxu0 0.0
  %1967 = vmatpush.msra.mxu0 0.0
  %1968 = vmatpush.msra.mxu0 0.0
  %1969 = vmatpush.msra.mxu0 0.0
  %1970 = vmatpush.msra.mxu0 0.0
  %1971 = vmatpush.msra.mxu0 0.0
  %1972 = vmatpush.msra.mxu0 0.0
  %1973 = vmatpush.msra.mxu0 0.0
  %v1974 = vand.u32 %v1806, 4294901760
  %1975 = vmatpush.msra.mxu0 %v1974
  %v1976 = vand.u32 %v1799, 4294901760
  %1977 = vmatmul.f32.gmra.mxu0 %v1976
  %v1978 = vpop.f32.mrf.mxu0
  %v1979 = vadd.f32 %v1953, %v1978
  %v1980 = vand.u32 %v1802, 4294901760
  %1981 = vmatmul.f32.gmra.mxu0 %v1980
  %v1982 = vpop.f32.mrf.mxu0
  %v1983 = vadd.f32 %v1957, %v1982
  %1984 = vdwg.mxu0
  %v1985 = vadd.f32 %v1791, %v1979
  %v1986 = vadd.f32 %v1795, %v1983
  %v1987 = vld [vmem:[%s6 + $0x70] sm:$0x1]
  %v1988 = vperm.slane %v1987, 0
  %v1989 = vadd.f32 %v1985, %v1988
  %v1990 = vadd.f32 %v1986, %v1988
  %v1991 = vmax.f32 %v1989, 0.0
  %v1992 = vmax.f32 %v1990, 0.0
  %v1993 = vld [vmem:[%s6 + $0x78] sm:$0xff]
  %v1994 = vld [vmem:[%s6 + $0x80] sm:$0xff]
  %v1995 = vld [vmem:[%s6 + $0x88] sm:$0xff]
  %v1996 = vld [vmem:[%s6 + $0x90] sm:$0xff]
  %v1997 = vld [vmem:[%s6 + $0x98] sm:$0x1]
  %v1998 = vperm.slane %v1997, 0
  %v2000 = vsel %vm707, %v1991, 0
  %v2003 = vsel %vm707, %v1992, 0
  %2005 = vmatpush.msra.mxu0 0.0
  %2006 = vmatpush.msra.mxu0 0.0
  %2007 = vmatpush.msra.mxu0 0.0
  %2008 = vmatpush.msra.mxu0 0.0
  %2009 = vmatpush.msra.mxu0 0.0
  %2010 = vmatpush.msra.mxu0 0.0
  %2011 = vmatpush.msra.mxu0 0.0
  %2012 = vmatpush.msra.mxu0 0.0
  %2013 = vmatpush.msra.mxu0 0.0
  %2014 = vmatpush.msra.mxu0 0.0
  %2015 = vmatpush.msra.mxu0 0.0
  %2016 = vmatpush.msra.mxu0 0.0
  %v2017 = vand.u32 %v1996, 4294901760
  %2018 = vmatpush.msra.mxu0 %v2017
  %v2019 = vand.u32 %v1995, 4294901760
  %2020 = vmatpush.msra.mxu0 %v2019
  %v2021 = vand.u32 %v1994, 4294901760
  %2022 = vmatpush.msra.mxu0 %v2021
  %v2023 = vand.u32 %v1993, 4294901760
  %2024 = vmatpush.msra.mxu0 %v2023
  %v2025 = vand.u32 %v2000, 4294901760
  %v2026 = vsub.f32 %v2000, %v2025
  %v2027 = vand.u32 %v2026, 4294901760
  %v2028 = vsub.f32 %v2026, %v2027
  %v2029 = vand.u32 %v2028, 4294901760
  %2030 = vmatmul.f32.gmra.mxu0 %v2029
  %v2031 = vpop.f32.mrf.mxu0
  %v2032 = vadd.f32 %v1998, %v2031
  %v2033 = vand.u32 %v2003, 4294901760
  %v2034 = vsub.f32 %v2003, %v2033
  %v2035 = vand.u32 %v2034, 4294901760
  %v2036 = vsub.f32 %v2034, %v2035
  %v2037 = vand.u32 %v2036, 4294901760
  %2038 = vmatmul.f32.gmra.mxu0 %v2037
  %v2039 = vpop.f32.mrf.mxu0
  %v2040 = vadd.f32 %v1998, %v2039
  %2041 = vdwg.mxu0
  %2042 = vmatpush.msra.mxu0 0.0
  %2043 = vmatpush.msra.mxu0 0.0
  %2044 = vmatpush.msra.mxu0 0.0
  %2045 = vmatpush.msra.mxu0 0.0
  %2046 = vmatpush.msra.mxu0 0.0
  %2047 = vmatpush.msra.mxu0 0.0
  %2048 = vmatpush.msra.mxu0 0.0
  %2049 = vmatpush.msra.mxu0 0.0
  %2050 = vmatpush.msra.mxu0 0.0
  %2051 = vmatpush.msra.mxu0 0.0
  %2052 = vmatpush.msra.mxu0 0.0
  %2053 = vmatpush.msra.mxu0 0.0
  %v2054 = vand.u32 %v1996, 4294901760
  %v2055 = vsub.f32 %v1996, %v2054
  %v2056 = vand.u32 %v2055, 4294901760
  %v2057 = vsub.f32 %v2055, %v2056
  %v2058 = vand.u32 %v2057, 4294901760
  %2059 = vmatpush.msra.mxu0 %v2058
  %v2060 = vand.u32 %v1995, 4294901760
  %v2061 = vsub.f32 %v1995, %v2060
  %v2062 = vand.u32 %v2061, 4294901760
  %v2063 = vsub.f32 %v2061, %v2062
  %v2064 = vand.u32 %v2063, 4294901760
  %2065 = vmatpush.msra.mxu0 %v2064
  %v2066 = vand.u32 %v1994, 4294901760
  %v2067 = vsub.f32 %v1994, %v2066
  %v2068 = vand.u32 %v2067, 4294901760
  %v2069 = vsub.f32 %v2067, %v2068
  %v2070 = vand.u32 %v2069, 4294901760
  %2071 = vmatpush.msra.mxu0 %v2070
  %v2072 = vand.u32 %v1993, 4294901760
  %v2073 = vsub.f32 %v1993, %v2072
  %v2074 = vand.u32 %v2073, 4294901760
  %v2075 = vsub.f32 %v2073, %v2074
  %v2076 = vand.u32 %v2075, 4294901760
  %2077 = vmatpush.msra.mxu0 %v2076
  %v2078 = vand.u32 %v2000, 4294901760
  %2079 = vmatmul.f32.gmra.mxu0 %v2078
  %v2080 = vpop.f32.mrf.mxu0
  %v2081 = vadd.f32 %v2032, %v2080
  %v2082 = vand.u32 %v2003, 4294901760
  %2083 = vmatmul.f32.gmra.mxu0 %v2082
  %v2084 = vpop.f32.mrf.mxu0
  %v2085 = vadd.f32 %v2040, %v2084
  %2086 = vdwg.mxu0
  %2087 = vmatpush.msra.mxu0 0.0
  %2088 = vmatpush.msra.mxu0 0.0
  %2089 = vmatpush.msra.mxu0 0.0
  %2090 = vmatpush.msra.mxu0 0.0
  %2091 = vmatpush.msra.mxu0 0.0
  %2092 = vmatpush.msra.mxu0 0.0
  %2093 = vmatpush.msra.mxu0 0.0
  %2094 = vmatpush.msra.mxu0 0.0
  %2095 = vmatpush.msra.mxu0 0.0
  %2096 = vmatpush.msra.mxu0 0.0
  %2097 = vmatpush.msra.mxu0 0.0
  %2098 = vmatpush.msra.mxu0 0.0
  %v2099 = vand.u32 %v1996, 4294901760
  %v2100 = vsub.f32 %v1996, %v2099
  %2101 = vmatpush.msra.mxu0 %v2100
  %v2102 = vand.u32 %v1995, 4294901760
  %v2103 = vsub.f32 %v1995, %v2102
  %2104 = vmatpush.msra.mxu0 %v2103
  %v2105 = vand.u32 %v1994, 4294901760
  %v2106 = vsub.f32 %v1994, %v2105
  %2107 = vmatpush.msra.mxu0 %v2106
  %v2108 = vand.u32 %v1993, 4294901760
  %v2109 = vsub.f32 %v1993, %v2108
  %2110 = vmatpush.msra.mxu0 %v2109
  %v2111 = vand.u32 %v2000, 4294901760
  %v2112 = vsub.f32 %v2000, %v2111
  %2113 = vmatmul.f32.gmra.mxu0 %v2112
  %v2114 = vpop.f32.mrf.mxu0
  %v2115 = vadd.f32 %v2081, %v2114
  %v2116 = vand.u32 %v2003, 4294901760
  %v2117 = vsub.f32 %v2003, %v2116
  %2118 = vmatmul.f32.gmra.mxu0 %v2117
  %v2119 = vpop.f32.mrf.mxu0
  %v2120 = vadd.f32 %v2085, %v2119
  %2121 = vdwg.mxu0
  %2122 = vmatpush.msra.mxu0 0.0
  %2123 = vmatpush.msra.mxu0 0.0
  %2124 = vmatpush.msra.mxu0 0.0
  %2125 = vmatpush.msra.mxu0 0.0
  %2126 = vmatpush.msra.mxu0 0.0
  %2127 = vmatpush.msra.mxu0 0.0
  %2128 = vmatpush.msra.mxu0 0.0
  %2129 = vmatpush.msra.mxu0 0.0
  %2130 = vmatpush.msra.mxu0 0.0
  %2131 = vmatpush.msra.mxu0 0.0
  %2132 = vmatpush.msra.mxu0 0.0
  %2133 = vmatpush.msra.mxu0 0.0
  %v2134 = vand.u32 %v1996, 4294901760
  %2135 = vmatpush.msra.mxu0 %v2134
  %v2136 = vand.u32 %v1995, 4294901760
  %2137 = vmatpush.msra.mxu0 %v2136
  %v2138 = vand.u32 %v1994, 4294901760
  %2139 = vmatpush.msra.mxu0 %v2138
  %v2140 = vand.u32 %v1993, 4294901760
  %2141 = vmatpush.msra.mxu0 %v2140
  %v2142 = vand.u32 %v2000, 4294901760
  %v2143 = vsub.f32 %v2000, %v2142
  %v2144 = vand.u32 %v2143, 4294901760
  %2145 = vmatmul.f32.gmra.mxu0 %v2144
  %v2146 = vpop.f32.mrf.mxu0
  %v2147 = vadd.f32 %v2115, %v2146
  %v2148 = vand.u32 %v2003, 4294901760
  %v2149 = vsub.f32 %v2003, %v2148
  %v2150 = vand.u32 %v2149, 4294901760
  %2151 = vmatmul.f32.gmra.mxu0 %v2150
  %v2152 = vpop.f32.mrf.mxu0
  %v2153 = vadd.f32 %v2120, %v2152
  %2154 = vdwg.mxu0
  %2155 = vmatpush.msra.mxu0 0.0
  %2156 = vmatpush.msra.mxu0 0.0
  %2157 = vmatpush.msra.mxu0 0.0
  %2158 = vmatpush.msra.mxu0 0.0
  %2159 = vmatpush.msra.mxu0 0.0
  %2160 = vmatpush.msra.mxu0 0.0
  %2161 = vmatpush.msra.mxu0 0.0
  %2162 = vmatpush.msra.mxu0 0.0
  %2163 = vmatpush.msra.mxu0 0.0
  %2164 = vmatpush.msra.mxu0 0.0
  %2165 = vmatpush.msra.mxu0 0.0
  %2166 = vmatpush.msra.mxu0 0.0
  %v2167 = vand.u32 %v1996, 4294901760
  %v2168 = vsub.f32 %v1996, %v2167
  %v2169 = vand.u32 %v2168, 4294901760
  %2170 = vmatpush.msra.mxu0 %v2169
  %v2171 = vand.u32 %v1995, 4294901760
  %v2172 = vsub.f32 %v1995, %v2171
  %v2173 = vand.u32 %v2172, 4294901760
  %2174 = vmatpush.msra.mxu0 %v2173
  %v2175 = vand.u32 %v1994, 4294901760
  %v2176 = vsub.f32 %v1994, %v2175
  %v2177 = vand.u32 %v2176, 4294901760
  %2178 = vmatpush.msra.mxu0 %v2177
  %v2179 = vand.u32 %v1993, 4294901760
  %v2180 = vsub.f32 %v1993, %v2179
  %v2181 = vand.u32 %v2180, 4294901760
  %2182 = vmatpush.msra.mxu0 %v2181
  %v2183 = vand.u32 %v2000, 4294901760
  %2184 = vmatmul.f32.gmra.mxu0 %v2183
  %v2185 = vpop.f32.mrf.mxu0
  %v2186 = vadd.f32 %v2147, %v2185
  %v2187 = vand.u32 %v2003, 4294901760
  %2188 = vmatmul.f32.gmra.mxu0 %v2187
  %v2189 = vpop.f32.mrf.mxu0
  %v2190 = vadd.f32 %v2153, %v2189
  %2191 = vdwg.mxu0
  %2192 = vmatpush.msra.mxu0 0.0
  %2193 = vmatpush.msra.mxu0 0.0
  %2194 = vmatpush.msra.mxu0 0.0
  %2195 = vmatpush.msra.mxu0 0.0
  %2196 = vmatpush.msra.mxu0 0.0
  %2197 = vmatpush.msra.mxu0 0.0
  %2198 = vmatpush.msra.mxu0 0.0
  %2199 = vmatpush.msra.mxu0 0.0
  %2200 = vmatpush.msra.mxu0 0.0
  %2201 = vmatpush.msra.mxu0 0.0
  %2202 = vmatpush.msra.mxu0 0.0
  %2203 = vmatpush.msra.mxu0 0.0
  %v2204 = vand.u32 %v1996, 4294901760
  %2205 = vmatpush.msra.mxu0 %v2204
  %v2206 = vand.u32 %v1995, 4294901760
  %2207 = vmatpush.msra.mxu0 %v2206
  %v2208 = vand.u32 %v1994, 4294901760
  %2209 = vmatpush.msra.mxu0 %v2208
  %v2210 = vand.u32 %v1993, 4294901760
  %2211 = vmatpush.msra.mxu0 %v2210
  %v2212 = vand.u32 %v2000, 4294901760
  %2213 = vmatmul.f32.gmra.mxu0 %v2212
  %v2214 = vpop.f32.mrf.mxu0
  %v2215 = vadd.f32 %v2186, %v2214
  %v2216 = vand.u32 %v2003, 4294901760
  %2217 = vmatmul.f32.gmra.mxu0 %v2216
  %v2218 = vpop.f32.mrf.mxu0
  %v2219 = vadd.f32 %v2190, %v2218
  %2220 = vdwg.mxu0
  %2221 = vst.msk [vmem:[%s7] sm:$0xff] %vm29, %v2215
  %2222 = vst.msk [vmem:[%s7 + $0x8] sm:$0xff] %vm29, %v2219
  // Predicated region
  $region30: #{node_model_forward.1} parent=0 // pred_check
    _
  $region31: #{node_model_forward.1} parent=0 // pred_check_branch
    %2224 = sbr.rel (0) target = $region33
  $region32: #{node_model_forward.1} parent=0 // pred_region
    _
  $region33: #{node_model_forward.1} parent=0 // pred_fallthru
    _
  // Predicated region
  $region34: #{node_model_forward.1} parent=0 // pred_check
    _
  $region35: #{node_model_forward.1} parent=0 // pred_check_branch
    %2226 = sbr.rel (0) target = $region37
  $region36: #{node_model_forward.1} parent=0 // pred_region
    _
  $region37: #{node_model_forward.1} parent=0 // pred_fallthru
    _

</llo_original>
